<compile_context>
chip_gen: v5e
topology: v5e:2x2
jax: 0.10.0
libtpu: 0.0.40
codegen_flags: <defaults>
</compile_context>

<pallas_src>
import math

import jax
import jax.numpy as jnp
from jax import lax
from jax.experimental import pallas as pl
from jax.experimental.pallas import tpu as pltpu

# ---------------- config (small, consistent with the module) ----------------
HIDDEN = 32
HEADS = 4
HEAD_DIM = HIDDEN // HEADS
INTER = 64
LN_EPS = 1e-12
SCALE = 1.0 / math.sqrt(HEAD_DIM)


# ------------------------------ fused Pallas kernel --------------------------
def _lxmert_x_layer_kernel(
    x_ref, ctx_ref, self_mask_ref, cross_mask_ref,
    xqkv_w_ref, xqkv_b_ref, xo_w_ref, xo_b_ref, xln_g_ref, xln_b_ref,
    sqkv_w_ref, sqkv_b_ref,
    iw_ref, ib_ref, ow_ref, ob_ref, oln_g_ref, oln_b_ref,
    out_ref,
):
    f32 = jnp.float32
    x = x_ref[0, 0].astype(f32)            # (L, H)   query-stream tokens
    ctx = ctx_ref[0, 0].astype(f32)        # (L, H)   other-stream tokens
    self_mask = self_mask_ref[0, 0]        # (1, L)   additive
    cross_mask = cross_mask_ref[0, 0]      # (1, L)   additive

    # Lane masks selecting each head's HEAD_DIM columns of the HIDDEN axis.
    lane = lax.broadcasted_iota(jnp.int32, (1, HIDDEN), 1)
    head_masks = [
        jnp.logical_and(lane >= h * HEAD_DIM, lane < (h + 1) * HEAD_DIM).astype(f32)
        for h in range(HEADS)
    ]

    def layer_norm(y, g, b):
        mean = jnp.mean(y, axis=-1, keepdims=True)
        var = jnp.mean(jnp.square(y - mean), axis=-1, keepdims=True)
        return (y - mean) * lax.rsqrt(var + LN_EPS) * g + b

    def attend(q, k, v, add_mask):
        # q, k, v: (L, H); add_mask: (1, L) additive.  Heads handled via lane
        # masks so all matmuls stay HIDDEN lanes wide; result is (L, H) with
        # heads already merged (lane-contiguous).
        acc = jnp.zeros(q.shape, dtype=f32)
        for hm in head_masks:
            s = lax.dot_general(q * hm, k, (((1,), (1,)), ((), ())),
                                preferred_element_type=f32)
            s = s * SCALE + add_mask
            s = s - jnp.max(s, axis=-1, keepdims=True)
            p = jnp.exp(s)
            p = p * pl.reciprocal(jnp.sum(p, axis=-1, keepdims=True), approx=True)
            acc = acc + lax.dot_general(p, v * hm, (((1,), (0,)), ((), ())),
                                        preferred_element_type=f32)
        return acc

    def proj(t, w, b):
        return jnp.dot(t, w, preferred_element_type=f32) + b

    # ---- cross-attention (shared visual_attention weights); dropout=identity --
    q = proj(x, xqkv_w_ref[0], xqkv_b_ref[0])
    k = proj(ctx, xqkv_w_ref[1], xqkv_b_ref[1])
    v = proj(ctx, xqkv_w_ref[2], xqkv_b_ref[2])
    att = attend(q, k, v, cross_mask)
    att = proj(att, xo_w_ref[...], xo_b_ref[...])
    x1 = layer_norm(att + x, xln_g_ref[...], xln_b_ref[...])

    # ---- self-attention (per-stream weights; BertAttention only, no out/LN) --
    q2 = proj(x1, sqkv_w_ref[0, 0], sqkv_b_ref[0, 0])
    k2 = proj(x1, sqkv_w_ref[0, 1], sqkv_b_ref[0, 1])
    v2 = proj(x1, sqkv_w_ref[0, 2], sqkv_b_ref[0, 2])
    x2 = attend(q2, k2, v2, self_mask)

    # ---- FFN: intermediate (exact-erf gelu) + output dense + residual LN ----
    h = proj(x2, iw_ref[0], ib_ref[0])
    h = h * 0.5 * (1.0 + lax.erf(h * (1.0 / math.sqrt(2.0))))
    o = proj(h, ow_ref[0], ob_ref[0])
    out = layer_norm(o + x2, oln_g_ref[0], oln_b_ref[0])

    out_ref[0, 0] = out.astype(out_ref.dtype)


# ------------------------------ wrapper ---------------------------------------
def lxmert_x_layer(params, audio_feats, audio_mask, visn_feats, visn_mask):
    """audio_feats:(B,La,H), visn_feats:(B,Lv,H), masks additive (B,1,1,Lk)."""
    B, La, H = audio_feats.shape
    Lv = visn_feats.shape[1]
    L = max(La, Lv)
    p = params

    def pad_feats(f):
        return jnp.pad(f, ((0, 0), (0, L - f.shape[1]), (0, 0)))

    def pad_mask(m):
        m = m.reshape(B, 1, m.shape[-1]).astype(jnp.float32)
        return jnp.pad(m, ((0, 0), (0, 0), (0, L - m.shape[-1])),
                       constant_values=-1e9)

    # stream 0 = audio, stream 1 = visual (padded to common length L)
    x = jnp.stack([pad_feats(audio_feats), pad_feats(visn_feats)], axis=0)   # (2,B,L,H)
    masks = jnp.stack([pad_mask(audio_mask), pad_mask(visn_mask)], axis=0)   # (2,B,1,L)

    def seq_spec(flip):
        if flip:
            return pl.BlockSpec((1, 1, L, HIDDEN), lambda s, b: (1 - s, b, 0, 0))
        return pl.BlockSpec((1, 1, L, HIDDEN), lambda s, b: (s, b, 0, 0))

    def mask_spec(flip):
        if flip:
            return pl.BlockSpec((1, 1, 1, L), lambda s, b: (1 - s, b, 0, 0))
        return pl.BlockSpec((1, 1, 1, L), lambda s, b: (s, b, 0, 0))

    def shared(shape):
        zeros = (0,) * len(shape)
        return pl.BlockSpec(shape, lambda s, b: zeros)

    def per_stream(shape):
        block = (1,) + tuple(shape[1:])
        rest = (0,) * (len(shape) - 1)
        return pl.BlockSpec(block, lambda s, b: (s,) + rest)

    out = pl.pallas_call(
        _lxmert_x_layer_kernel,
        out_shape=jax.ShapeDtypeStruct((2, B, L, HIDDEN), audio_feats.dtype),
        grid=(2, B),
        in_specs=[
            seq_spec(False),                 # x   (query stream)
            seq_spec(True),                  # ctx (other stream)
            mask_spec(False),                # self mask
            mask_spec(True),                 # cross mask (keys = other stream)
            shared(p["x_qkv_w"].shape),
            shared(p["x_qkv_b"].shape),
            shared(p["x_o_w"].shape),
            shared(p["x_o_b"].shape),
            shared(p["x_ln_g"].shape),
            shared(p["x_ln_b"].shape),
            per_stream(p["s_qkv_w"].shape),
            per_stream(p["s_qkv_b"].shape),
            per_stream(p["i_w"].shape),
            per_stream(p["i_b"].shape),
            per_stream(p["o_w"].shape),
            per_stream(p["o_b"].shape),
            per_stream(p["o_ln_g"].shape),
            per_stream(p["o_ln_b"].shape),
        ],
        out_specs=pl.BlockSpec((1, 1, L, HIDDEN), lambda s, b: (s, b, 0, 0)),
        compiler_params=pltpu.CompilerParams(
            dimension_semantics=("parallel", "parallel")),
    )(
        x, x, masks, masks,
        p["x_qkv_w"], p["x_qkv_b"], p["x_o_w"], p["x_o_b"], p["x_ln_g"], p["x_ln_b"],
        p["s_qkv_w"], p["s_qkv_b"],
        p["i_w"], p["i_b"], p["o_w"], p["o_b"], p["o_ln_g"], p["o_ln_b"],
    )

    audio_out = out[0, :, :La, :]
    visn_out = out[1, :, :Lv, :]
    return audio_out, visn_out


# ------------------------------ parameter init --------------------------------
def init_params(key):
    ks = iter(jax.random.split(key, 8))

    def w(shape, scale=0.02):
        return jax.random.normal(next(ks), shape, jnp.float32) * scale

    return {
        # shared cross-attention (visual_attention): stacked [q,k,v] weights
        "x_qkv_w": w((3, HIDDEN, HIDDEN)),
        "x_qkv_b": jnp.zeros((3, 1, HIDDEN), jnp.float32),
        "x_o_w":   w((HIDDEN, HIDDEN)),
        "x_o_b":   jnp.zeros((1, HIDDEN), jnp.float32),
        "x_ln_g":  jnp.ones((1, HIDDEN), jnp.float32),
        "x_ln_b":  jnp.zeros((1, HIDDEN), jnp.float32),
        # per-stream self-attention (stream 0 = audio, 1 = visual)
        "s_qkv_w": w((2, 3, HIDDEN, HIDDEN)),
        "s_qkv_b": jnp.zeros((2, 3, 1, HIDDEN), jnp.float32),
        # per-stream FFN
        "i_w": w((2, HIDDEN, INTER)),
        "i_b": jnp.zeros((2, 1, INTER), jnp.float32),
        "o_w": w((2, INTER, HIDDEN)),
        "o_b": jnp.zeros((2, 1, HIDDEN), jnp.float32),
        "o_ln_g": jnp.ones((2, 1, HIDDEN), jnp.float32),
        "o_ln_b": jnp.zeros((2, 1, HIDDEN), jnp.float32),
    }


# ------------------------------ pure-JAX reference ----------------------------
def _reference(p, audio_feats, audio_mask, visn_feats, visn_mask):
    def attn(xq, xc, mask, qkv_w, qkv_b):
        B, Lq, _ = xq.shape
        Lk = xc.shape[1]
        q = xq @ qkv_w[0] + qkv_b[0]
        k = xc @ qkv_w[1] + qkv_b[1]
        v = xc @ qkv_w[2] + qkv_b[2]
        sp = lambda t, Lt: t.reshape(B, Lt, HEADS, HEAD_DIM).transpose(0, 2, 1, 3)
        q, k, v = sp(q, Lq), sp(k, Lk), sp(v, Lk)
        s = jnp.einsum("bhqd,bhkd->bhqk", q, k) * SCALE + mask
        pr = jax.nn.softmax(s, axis=-1)
        c = jnp.einsum("bhqk,bhkd->bhqd", pr, v)
        return c.transpose(0, 2, 1, 3).reshape(B, Lq, HIDDEN)

    def ln(y, g, b):
        m = y.mean(-1, keepdims=True)
        v = ((y - m) ** 2).mean(-1, keepdims=True)
        return (y - m) / jnp.sqrt(v + LN_EPS) * g + b

    gelu = lambda t: t * 0.5 * (1.0 + lax.erf(t / math.sqrt(2.0)))

    feats = [audio_feats, visn_feats]
    masks = [audio_mask, visn_mask]
    outs = []
    for s in range(2):
        xq, xc = feats[s], feats[1 - s]
        cross = attn(xq, xc, masks[1 - s], p["x_qkv_w"], p["x_qkv_b"])
        cross = cross @ p["x_o_w"] + p["x_o_b"]
        x1 = ln(cross + xq, p["x_ln_g"], p["x_ln_b"])
        sa = attn(x1, x1, masks[s], p["s_qkv_w"][s], p["s_qkv_b"][s])
        h = gelu(sa @ p["i_w"][s] + p["i_b"][s])
        o = h @ p["o_w"][s] + p["o_b"][s]
        outs.append(ln(o + sa, p["o_ln_g"][s], p["o_ln_b"][s]))
    return outs[0], outs[1]


# ----------------------------------- main --------------------------------------
if __name__ == "__main__":
    key = jax.random.PRNGKey(0)
    k_par, k_a, k_v = jax.random.split(key, 3)

    B, L_AUDIO, L_VISN = 2, 8, 16
    params = init_params(k_par)

    audio_feats = jax.random.normal(k_a, (B, L_AUDIO, HIDDEN), jnp.float32)
    visn_feats = jax.random.normal(k_v, (B, L_VISN, HIDDEN), jnp.float32)

    # additive masks (0 = keep, -1e4 = masked), deterministic
    audio_pos = lax.broadcasted_iota(jnp.int32, (B, 1, 1, L_AUDIO), 3)
    visn_pos = lax.broadcasted_iota(jnp.int32, (B, 1, 1, L_VISN), 3)
    audio_mask = jnp.where(audio_pos < 6, 0.0, -10000.0).astype(jnp.float32)
    visn_mask = jnp.where(visn_pos < 12, 0.0, -10000.0).astype(jnp.float32)

    audio_out, visn_out = jax.jit(lxmert_x_layer)(
        params, audio_feats, audio_mask, visn_feats, visn_mask)
    jax.block_until_ready((audio_out, visn_out))

    assert audio_out.shape == (B, L_AUDIO, HIDDEN)
    assert visn_out.shape == (B, L_VISN, HIDDEN)
    assert bool(jnp.isfinite(audio_out).all()) and bool(jnp.isfinite(visn_out).all())

    # sanity check against a pure-JAX reference (loose tol: approx reciprocal)
    ref_a, ref_v = _reference(params, audio_feats, audio_mask, visn_feats, visn_mask)
    err = max(float(jnp.max(jnp.abs(audio_out - ref_a))),
              float(jnp.max(jnp.abs(visn_out - ref_v))))
    assert err < 5e-2, f"max abs error vs reference too large: {err}"

    print("KERNEL_OK")
</pallas_src>

<mosaic_0001>
module attributes {stable_mosaic.version = 11 : i64} {
  func.func @_lxmert_x_layer_kernel(%arg0: i32, %arg1: i32, %arg2: memref<1x1x16x32xf32, #tpu.memory_space<vmem>>, %arg3: memref<1x1x16x32xf32, #tpu.memory_space<vmem>>, %arg4: memref<1x1x1x16xf32, #tpu.memory_space<vmem>>, %arg5: memref<1x1x1x16xf32, #tpu.memory_space<vmem>>, %arg6: memref<3x32x32xf32, #tpu.memory_space<vmem>>, %arg7: memref<3x1x32xf32, #tpu.memory_space<vmem>>, %arg8: memref<32x32xf32, #tpu.memory_space<vmem>>, %arg9: memref<1x32xf32, #tpu.memory_space<vmem>>, %arg10: memref<1x32xf32, #tpu.memory_space<vmem>>, %arg11: memref<1x32xf32, #tpu.memory_space<vmem>>, %arg12: memref<1x3x32x32xf32, #tpu.memory_space<vmem>>, %arg13: memref<1x3x1x32xf32, #tpu.memory_space<vmem>>, %arg14: memref<1x32x64xf32, #tpu.memory_space<vmem>>, %arg15: memref<1x1x64xf32, #tpu.memory_space<vmem>>, %arg16: memref<1x64x32xf32, #tpu.memory_space<vmem>>, %arg17: memref<1x1x32xf32, #tpu.memory_space<vmem>>, %arg18: memref<1x1x32xf32, #tpu.memory_space<vmem>>, %arg19: memref<1x1x32xf32, #tpu.memory_space<vmem>>, %arg20: memref<1x1x16x32xf32, #tpu.memory_space<vmem>>) attributes {dimension_semantics = [#tpu.dimension_semantics<parallel>, #tpu.dimension_semantics<parallel>], iteration_bounds = array<i64: 2, 2>, scalar_prefetch = 0 : i64, scratch_operands = 0 : i64, tpu.core_type = #tpu.core_type<tc>, window_params = [{transform_indices = @transform_0, window_bounds = array<i64: 1, 1, 16, 32>}, {transform_indices = @transform_1, window_bounds = array<i64: 1, 1, 16, 32>}, {transform_indices = @transform_2, window_bounds = array<i64: 1, 1, 1, 16>}, {transform_indices = @transform_3, window_bounds = array<i64: 1, 1, 1, 16>}, {pipeline_mode = #tpu.pipeline_mode<synchronous>, transform_indices = @transform_4, window_bounds = array<i64: 3, 32, 32>}, {pipeline_mode = #tpu.pipeline_mode<synchronous>, transform_indices = @transform_5, window_bounds = array<i64: 3, 1, 32>}, {pipeline_mode = #tpu.pipeline_mode<synchronous>, transform_indices = @transform_6, window_bounds = array<i64: 32, 32>}, {pipeline_mode = #tpu.pipeline_mode<synchronous>, transform_indices = @transform_7, window_bounds = array<i64: 1, 32>}, {pipeline_mode = #tpu.pipeline_mode<synchronous>, transform_indices = @transform_8, window_bounds = array<i64: 1, 32>}, {pipeline_mode = #tpu.pipeline_mode<synchronous>, transform_indices = @transform_9, window_bounds = array<i64: 1, 32>}, {transform_indices = @transform_10, window_bounds = array<i64: 1, 3, 32, 32>}, {transform_indices = @transform_11, window_bounds = array<i64: 1, 3, 1, 32>}, {transform_indices = @transform_12, window_bounds = array<i64: 1, 32, 64>}, {transform_indices = @transform_13, window_bounds = array<i64: 1, 1, 64>}, {transform_indices = @transform_14, window_bounds = array<i64: 1, 64, 32>}, {transform_indices = @transform_15, window_bounds = array<i64: 1, 1, 32>}, {transform_indices = @transform_16, window_bounds = array<i64: 1, 1, 32>}, {transform_indices = @transform_17, window_bounds = array<i64: 1, 1, 32>}, {transform_indices = @transform_18, window_bounds = array<i64: 1, 1, 16, 32>}]} {
    %c0 = arith.constant 0 : index
    %c0_0 = arith.constant 0 : index
    %c0_1 = arith.constant 0 : index
    %c0_2 = arith.constant 0 : index
    %0 = vector.load %arg2[%c0, %c0_0, %c0_1, %c0_2] : memref<1x1x16x32xf32, #tpu.memory_space<vmem>>, vector<1x1x16x32xf32>
    %1 = vector.shape_cast %0 : vector<1x1x16x32xf32> to vector<16x32xf32>
    %c0_3 = arith.constant 0 : index
    %c0_4 = arith.constant 0 : index
    %c0_5 = arith.constant 0 : index
    %c0_6 = arith.constant 0 : index
    %2 = vector.load %arg3[%c0_3, %c0_4, %c0_5, %c0_6] : memref<1x1x16x32xf32, #tpu.memory_space<vmem>>, vector<1x1x16x32xf32>
    %3 = vector.shape_cast %2 : vector<1x1x16x32xf32> to vector<16x32xf32>
    %c0_7 = arith.constant 0 : index
    %c0_8 = arith.constant 0 : index
    %c0_9 = arith.constant 0 : index
    %c0_10 = arith.constant 0 : index
    %4 = vector.load %arg4[%c0_7, %c0_8, %c0_9, %c0_10] : memref<1x1x1x16xf32, #tpu.memory_space<vmem>>, vector<1x1x1x16xf32>
    %5 = vector.shape_cast %4 : vector<1x1x1x16xf32> to vector<1x16xf32>
    %c0_11 = arith.constant 0 : index
    %c0_12 = arith.constant 0 : index
    %c0_13 = arith.constant 0 : index
    %c0_14 = arith.constant 0 : index
    %6 = vector.load %arg5[%c0_11, %c0_12, %c0_13, %c0_14] : memref<1x1x1x16xf32, #tpu.memory_space<vmem>>, vector<1x1x1x16xf32>
    %7 = vector.shape_cast %6 : vector<1x1x1x16xf32> to vector<1x16xf32>
    %8 = tpu.iota {dimensions = array<i32: 1>} : vector<1x32xi32>
    %c0_i32 = arith.constant 0 : i32
    %9 = vector.broadcast %c0_i32 : i32 to vector<1x32xi32>
    %10 = arith.cmpi sge, %8, %9 : vector<1x32xi32>
    %c8_i32 = arith.constant 8 : i32
    %11 = vector.broadcast %c8_i32 : i32 to vector<1x32xi32>
    %12 = arith.cmpi slt, %8, %11 : vector<1x32xi32>
    %13 = arith.andi %10, %12 : vector<1x32xi1>
    %14 = arith.extui %13 : vector<1x32xi1> to vector<1x32xi32>
    %15 = arith.sitofp %14 : vector<1x32xi32> to vector<1x32xf32>
    %c8_i32_15 = arith.constant 8 : i32
    %16 = vector.broadcast %c8_i32_15 : i32 to vector<1x32xi32>
    %17 = arith.cmpi sge, %8, %16 : vector<1x32xi32>
    %c16_i32 = arith.constant 16 : i32
    %18 = vector.broadcast %c16_i32 : i32 to vector<1x32xi32>
    %19 = arith.cmpi slt, %8, %18 : vector<1x32xi32>
    %20 = arith.andi %17, %19 : vector<1x32xi1>
    %21 = arith.extui %20 : vector<1x32xi1> to vector<1x32xi32>
    %22 = arith.sitofp %21 : vector<1x32xi32> to vector<1x32xf32>
    %c16_i32_16 = arith.constant 16 : i32
    %23 = vector.broadcast %c16_i32_16 : i32 to vector<1x32xi32>
    %24 = arith.cmpi sge, %8, %23 : vector<1x32xi32>
    %c24_i32 = arith.constant 24 : i32
    %25 = vector.broadcast %c24_i32 : i32 to vector<1x32xi32>
    %26 = arith.cmpi slt, %8, %25 : vector<1x32xi32>
    %27 = arith.andi %24, %26 : vector<1x32xi1>
    %28 = arith.extui %27 : vector<1x32xi1> to vector<1x32xi32>
    %29 = arith.sitofp %28 : vector<1x32xi32> to vector<1x32xf32>
    %c24_i32_17 = arith.constant 24 : i32
    %30 = vector.broadcast %c24_i32_17 : i32 to vector<1x32xi32>
    %31 = arith.cmpi sge, %8, %30 : vector<1x32xi32>
    %c32_i32 = arith.constant 32 : i32
    %32 = vector.broadcast %c32_i32 : i32 to vector<1x32xi32>
    %33 = arith.cmpi slt, %8, %32 : vector<1x32xi32>
    %34 = arith.andi %31, %33 : vector<1x32xi1>
    %35 = arith.extui %34 : vector<1x32xi1> to vector<1x32xi32>
    %36 = arith.sitofp %35 : vector<1x32xi32> to vector<1x32xf32>
    %c0_18 = arith.constant 0 : index
    %c0_19 = arith.constant 0 : index
    %c0_20 = arith.constant 0 : index
    %37 = vector.load %arg6[%c0_18, %c0_19, %c0_20] : memref<3x32x32xf32, #tpu.memory_space<vmem>>, vector<1x32x32xf32>
    %38 = vector.shape_cast %37 : vector<1x32x32xf32> to vector<32x32xf32>
    %c0_21 = arith.constant 0 : index
    %c0_22 = arith.constant 0 : index
    %c0_23 = arith.constant 0 : index
    %39 = vector.load %arg7[%c0_21, %c0_22, %c0_23] : memref<3x1x32xf32, #tpu.memory_space<vmem>>, vector<1x1x32xf32>
    %40 = vector.shape_cast %39 : vector<1x1x32xf32> to vector<1x32xf32>
    %cst = arith.constant dense<0.000000e+00> : vector<16x32xf32>
    %41 = tpu.matmul %1, %38, %cst {dimension_numbers = #tpu.dot_dimension_numbers<[1], [0], [0], [1], [0, 0, 1, 1], [], []>} : vector<16x32xf32>, vector<32x32xf32>, vector<16x32xf32> -> vector<16x32xf32>
    %42 = vector.broadcast %40 : vector<1x32xf32> to vector<16x32xf32>
    %43 = arith.addf %41, %42 : vector<16x32xf32>
    %c1 = arith.constant 1 : index
    %c0_24 = arith.constant 0 : index
    %c0_25 = arith.constant 0 : index
    %44 = vector.load %arg6[%c1, %c0_24, %c0_25] : memref<3x32x32xf32, #tpu.memory_space<vmem>>, vector<1x32x32xf32>
    %45 = vector.shape_cast %44 : vector<1x32x32xf32> to vector<32x32xf32>
    %c1_26 = arith.constant 1 : index
    %c0_27 = arith.constant 0 : index
    %c0_28 = arith.constant 0 : index
    %46 = vector.load %arg7[%c1_26, %c0_27, %c0_28] : memref<3x1x32xf32, #tpu.memory_space<vmem>>, vector<1x1x32xf32>
    %47 = vector.shape_cast %46 : vector<1x1x32xf32> to vector<1x32xf32>
    %cst_29 = arith.constant dense<0.000000e+00> : vector<16x32xf32>
    %48 = tpu.matmul %3, %45, %cst_29 {dimension_numbers = #tpu.dot_dimension_numbers<[1], [0], [0], [1], [0, 0, 1, 1], [], []>} : vector<16x32xf32>, vector<32x32xf32>, vector<16x32xf32> -> vector<16x32xf32>
    %49 = vector.broadcast %47 : vector<1x32xf32> to vector<16x32xf32>
    %50 = arith.addf %48, %49 : vector<16x32xf32>
    %c2 = arith.constant 2 : index
    %c0_30 = arith.constant 0 : index
    %c0_31 = arith.constant 0 : index
    %51 = vector.load %arg6[%c2, %c0_30, %c0_31] : memref<3x32x32xf32, #tpu.memory_space<vmem>>, vector<1x32x32xf32>
    %52 = vector.shape_cast %51 : vector<1x32x32xf32> to vector<32x32xf32>
    %c2_32 = arith.constant 2 : index
    %c0_33 = arith.constant 0 : index
    %c0_34 = arith.constant 0 : index
    %53 = vector.load %arg7[%c2_32, %c0_33, %c0_34] : memref<3x1x32xf32, #tpu.memory_space<vmem>>, vector<1x1x32xf32>
    %54 = vector.shape_cast %53 : vector<1x1x32xf32> to vector<1x32xf32>
    %cst_35 = arith.constant dense<0.000000e+00> : vector<16x32xf32>
    %55 = tpu.matmul %3, %52, %cst_35 {dimension_numbers = #tpu.dot_dimension_numbers<[1], [0], [0], [1], [0, 0, 1, 1], [], []>} : vector<16x32xf32>, vector<32x32xf32>, vector<16x32xf32> -> vector<16x32xf32>
    %56 = vector.broadcast %54 : vector<1x32xf32> to vector<16x32xf32>
    %57 = arith.addf %55, %56 : vector<16x32xf32>
    %cst_36 = arith.constant 0.000000e+00 : f32
    %58 = vector.broadcast %cst_36 : f32 to vector<16x32xf32>
    %59 = vector.broadcast %15 : vector<1x32xf32> to vector<16x32xf32>
    %60 = arith.mulf %43, %59 : vector<16x32xf32>
    %cst_37 = arith.constant dense<0.000000e+00> : vector<16x16xf32>
    %61 = tpu.matmul %60, %50, %cst_37 {dimension_numbers = #tpu.dot_dimension_numbers<[1], [1], [0], [0], [0, 0, 1, 0], [], []>} : vector<16x32xf32>, vector<16x32xf32>, vector<16x16xf32> -> vector<16x16xf32>
    %cst_38 = arith.constant 0.353553385 : f32
    %62 = vector.broadcast %cst_38 : f32 to vector<16x16xf32>
    %63 = arith.mulf %61, %62 : vector<16x16xf32>
    %64 = vector.broadcast %7 : vector<1x16xf32> to vector<16x16xf32>
    %65 = arith.addf %63, %64 : vector<16x16xf32>
    %cst_39 = arith.constant dense<0xFF800000> : vector<16xf32>
    %66 = vector.multi_reduction <maximumf>, %65, %cst_39 [1] : vector<16x16xf32> to vector<16xf32>
    %67 = vector.shape_cast %66 : vector<16xf32> to vector<16x1xf32>
    %68 = vector.broadcast %67 : vector<16x1xf32> to vector<16x16xf32>
    %69 = arith.subf %65, %68 : vector<16x16xf32>
    %70 = math.exp %69 : vector<16x16xf32>
    %cst_40 = arith.constant dense<0.000000e+00> : vector<16xf32>
    %71 = vector.multi_reduction <add>, %70, %cst_40 [1] : vector<16x16xf32> to vector<16xf32>
    %72 = vector.shape_cast %71 : vector<16xf32> to vector<16x1xf32>
    %73 = tpu.reciprocal %72 {approx = true} : vector<16x1xf32> -> vector<16x1xf32>
    %74 = vector.broadcast %73 : vector<16x1xf32> to vector<16x16xf32>
    %75 = arith.mulf %70, %74 : vector<16x16xf32>
    %76 = vector.broadcast %15 : vector<1x32xf32> to vector<16x32xf32>
    %77 = arith.mulf %57, %76 : vector<16x32xf32>
    %cst_41 = arith.constant dense<0.000000e+00> : vector<16x32xf32>
    %78 = tpu.matmul %75, %77, %cst_41 {dimension_numbers = #tpu.dot_dimension_numbers<[1], [0], [0], [1], [0, 0, 1, 1], [], []>} : vector<16x16xf32>, vector<16x32xf32>, vector<16x32xf32> -> vector<16x32xf32>
    %79 = arith.addf %58, %78 : vector<16x32xf32>
    %80 = vector.broadcast %22 : vector<1x32xf32> to vector<16x32xf32>
    %81 = arith.mulf %43, %80 : vector<16x32xf32>
    %cst_42 = arith.constant dense<0.000000e+00> : vector<16x16xf32>
    %82 = tpu.matmul %81, %50, %cst_42 {dimension_numbers = #tpu.dot_dimension_numbers<[1], [1], [0], [0], [0, 0, 1, 0], [], []>} : vector<16x32xf32>, vector<16x32xf32>, vector<16x16xf32> -> vector<16x16xf32>
    %cst_43 = arith.constant 0.353553385 : f32
    %83 = vector.broadcast %cst_43 : f32 to vector<16x16xf32>
    %84 = arith.mulf %82, %83 : vector<16x16xf32>
    %85 = vector.broadcast %7 : vector<1x16xf32> to vector<16x16xf32>
    %86 = arith.addf %84, %85 : vector<16x16xf32>
    %cst_44 = arith.constant dense<0xFF800000> : vector<16xf32>
    %87 = vector.multi_reduction <maximumf>, %86, %cst_44 [1] : vector<16x16xf32> to vector<16xf32>
    %88 = vector.shape_cast %87 : vector<16xf32> to vector<16x1xf32>
    %89 = vector.broadcast %88 : vector<16x1xf32> to vector<16x16xf32>
    %90 = arith.subf %86, %89 : vector<16x16xf32>
    %91 = math.exp %90 : vector<16x16xf32>
    %cst_45 = arith.constant dense<0.000000e+00> : vector<16xf32>
    %92 = vector.multi_reduction <add>, %91, %cst_45 [1] : vector<16x16xf32> to vector<16xf32>
    %93 = vector.shape_cast %92 : vector<16xf32> to vector<16x1xf32>
    %94 = tpu.reciprocal %93 {approx = true} : vector<16x1xf32> -> vector<16x1xf32>
    %95 = vector.broadcast %94 : vector<16x1xf32> to vector<16x16xf32>
    %96 = arith.mulf %91, %95 : vector<16x16xf32>
    %97 = vector.broadcast %22 : vector<1x32xf32> to vector<16x32xf32>
    %98 = arith.mulf %57, %97 : vector<16x32xf32>
    %cst_46 = arith.constant dense<0.000000e+00> : vector<16x32xf32>
    %99 = tpu.matmul %96, %98, %cst_46 {dimension_numbers = #tpu.dot_dimension_numbers<[1], [0], [0], [1], [0, 0, 1, 1], [], []>} : vector<16x16xf32>, vector<16x32xf32>, vector<16x32xf32> -> vector<16x32xf32>
    %100 = arith.addf %79, %99 : vector<16x32xf32>
    %101 = vector.broadcast %29 : vector<1x32xf32> to vector<16x32xf32>
    %102 = arith.mulf %43, %101 : vector<16x32xf32>
    %cst_47 = arith.constant dense<0.000000e+00> : vector<16x16xf32>
    %103 = tpu.matmul %102, %50, %cst_47 {dimension_numbers = #tpu.dot_dimension_numbers<[1], [1], [0], [0], [0, 0, 1, 0], [], []>} : vector<16x32xf32>, vector<16x32xf32>, vector<16x16xf32> -> vector<16x16xf32>
    %cst_48 = arith.constant 0.353553385 : f32
    %104 = vector.broadcast %cst_48 : f32 to vector<16x16xf32>
    %105 = arith.mulf %103, %104 : vector<16x16xf32>
    %106 = vector.broadcast %7 : vector<1x16xf32> to vector<16x16xf32>
    %107 = arith.addf %105, %106 : vector<16x16xf32>
    %cst_49 = arith.constant dense<0xFF800000> : vector<16xf32>
    %108 = vector.multi_reduction <maximumf>, %107, %cst_49 [1] : vector<16x16xf32> to vector<16xf32>
    %109 = vector.shape_cast %108 : vector<16xf32> to vector<16x1xf32>
    %110 = vector.broadcast %109 : vector<16x1xf32> to vector<16x16xf32>
    %111 = arith.subf %107, %110 : vector<16x16xf32>
    %112 = math.exp %111 : vector<16x16xf32>
    %cst_50 = arith.constant dense<0.000000e+00> : vector<16xf32>
    %113 = vector.multi_reduction <add>, %112, %cst_50 [1] : vector<16x16xf32> to vector<16xf32>
    %114 = vector.shape_cast %113 : vector<16xf32> to vector<16x1xf32>
    %115 = tpu.reciprocal %114 {approx = true} : vector<16x1xf32> -> vector<16x1xf32>
    %116 = vector.broadcast %115 : vector<16x1xf32> to vector<16x16xf32>
    %117 = arith.mulf %112, %116 : vector<16x16xf32>
    %118 = vector.broadcast %29 : vector<1x32xf32> to vector<16x32xf32>
    %119 = arith.mulf %57, %118 : vector<16x32xf32>
    %cst_51 = arith.constant dense<0.000000e+00> : vector<16x32xf32>
    %120 = tpu.matmul %117, %119, %cst_51 {dimension_numbers = #tpu.dot_dimension_numbers<[1], [0], [0], [1], [0, 0, 1, 1], [], []>} : vector<16x16xf32>, vector<16x32xf32>, vector<16x32xf32> -> vector<16x32xf32>
    %121 = arith.addf %100, %120 : vector<16x32xf32>
    %122 = vector.broadcast %36 : vector<1x32xf32> to vector<16x32xf32>
    %123 = arith.mulf %43, %122 : vector<16x32xf32>
    %cst_52 = arith.constant dense<0.000000e+00> : vector<16x16xf32>
    %124 = tpu.matmul %123, %50, %cst_52 {dimension_numbers = #tpu.dot_dimension_numbers<[1], [1], [0], [0], [0, 0, 1, 0], [], []>} : vector<16x32xf32>, vector<16x32xf32>, vector<16x16xf32> -> vector<16x16xf32>
    %cst_53 = arith.constant 0.353553385 : f32
    %125 = vector.broadcast %cst_53 : f32 to vector<16x16xf32>
    %126 = arith.mulf %124, %125 : vector<16x16xf32>
    %127 = vector.broadcast %7 : vector<1x16xf32> to vector<16x16xf32>
    %128 = arith.addf %126, %127 : vector<16x16xf32>
    %cst_54 = arith.constant dense<0xFF800000> : vector<16xf32>
    %129 = vector.multi_reduction <maximumf>, %128, %cst_54 [1] : vector<16x16xf32> to vector<16xf32>
    %130 = vector.shape_cast %129 : vector<16xf32> to vector<16x1xf32>
    %131 = vector.broadcast %130 : vector<16x1xf32> to vector<16x16xf32>
    %132 = arith.subf %128, %131 : vector<16x16xf32>
    %133 = math.exp %132 : vector<16x16xf32>
    %cst_55 = arith.constant dense<0.000000e+00> : vector<16xf32>
    %134 = vector.multi_reduction <add>, %133, %cst_55 [1] : vector<16x16xf32> to vector<16xf32>
    %135 = vector.shape_cast %134 : vector<16xf32> to vector<16x1xf32>
    %136 = tpu.reciprocal %135 {approx = true} : vector<16x1xf32> -> vector<16x1xf32>
    %137 = vector.broadcast %136 : vector<16x1xf32> to vector<16x16xf32>
    %138 = arith.mulf %133, %137 : vector<16x16xf32>
    %139 = vector.broadcast %36 : vector<1x32xf32> to vector<16x32xf32>
    %140 = arith.mulf %57, %139 : vector<16x32xf32>
    %cst_56 = arith.constant dense<0.000000e+00> : vector<16x32xf32>
    %141 = tpu.matmul %138, %140, %cst_56 {dimension_numbers = #tpu.dot_dimension_numbers<[1], [0], [0], [1], [0, 0, 1, 1], [], []>} : vector<16x16xf32>, vector<16x32xf32>, vector<16x32xf32> -> vector<16x32xf32>
    %142 = arith.addf %121, %141 : vector<16x32xf32>
    %c0_57 = arith.constant 0 : index
    %c0_58 = arith.constant 0 : index
    %143 = vector.load %arg8[%c0_57, %c0_58] : memref<32x32xf32, #tpu.memory_space<vmem>>, vector<32x32xf32>
    %c0_59 = arith.constant 0 : index
    %c0_60 = arith.constant 0 : index
    %144 = vector.load %arg9[%c0_59, %c0_60] : memref<1x32xf32, #tpu.memory_space<vmem>>, vector<1x32xf32>
    %cst_61 = arith.constant dense<0.000000e+00> : vector<16x32xf32>
    %145 = tpu.matmul %142, %143, %cst_61 {dimension_numbers = #tpu.dot_dimension_numbers<[1], [0], [0], [1], [0, 0, 1, 1], [], []>} : vector<16x32xf32>, vector<32x32xf32>, vector<16x32xf32> -> vector<16x32xf32>
    %146 = vector.broadcast %144 : vector<1x32xf32> to vector<16x32xf32>
    %147 = arith.addf %145, %146 : vector<16x32xf32>
    %148 = arith.addf %147, %1 : vector<16x32xf32>
    %c0_62 = arith.constant 0 : index
    %c0_63 = arith.constant 0 : index
    %149 = vector.load %arg10[%c0_62, %c0_63] : memref<1x32xf32, #tpu.memory_space<vmem>>, vector<1x32xf32>
    %c0_64 = arith.constant 0 : index
    %c0_65 = arith.constant 0 : index
    %150 = vector.load %arg11[%c0_64, %c0_65] : memref<1x32xf32, #tpu.memory_space<vmem>>, vector<1x32xf32>
    %cst_66 = arith.constant dense<0.000000e+00> : vector<16xf32>
    %151 = vector.multi_reduction <add>, %148, %cst_66 [1] : vector<16x32xf32> to vector<16xf32>
    %152 = vector.shape_cast %151 : vector<16xf32> to vector<16x1xf32>
    %cst_67 = arith.constant 3.200000e+01 : f32
    %153 = vector.broadcast %cst_67 : f32 to vector<16x1xf32>
    %154 = arith.divf %152, %153 : vector<16x1xf32>
    %155 = vector.broadcast %154 : vector<16x1xf32> to vector<16x32xf32>
    %156 = arith.subf %148, %155 : vector<16x32xf32>
    %157 = arith.mulf %156, %156 : vector<16x32xf32>
    %cst_68 = arith.constant dense<0.000000e+00> : vector<16xf32>
    %158 = vector.multi_reduction <add>, %157, %cst_68 [1] : vector<16x32xf32> to vector<16xf32>
    %159 = vector.shape_cast %158 : vector<16xf32> to vector<16x1xf32>
    %cst_69 = arith.constant 3.200000e+01 : f32
    %160 = vector.broadcast %cst_69 : f32 to vector<16x1xf32>
    %161 = arith.divf %159, %160 : vector<16x1xf32>
    %162 = vector.broadcast %154 : vector<16x1xf32> to vector<16x32xf32>
    %163 = arith.subf %148, %162 : vector<16x32xf32>
    %cst_70 = arith.constant 9.99999996E-13 : f32
    %164 = vector.broadcast %cst_70 : f32 to vector<16x1xf32>
    %165 = arith.addf %161, %164 : vector<16x1xf32>
    %166 = math.rsqrt %165 : vector<16x1xf32>
    %167 = vector.broadcast %166 : vector<16x1xf32> to vector<16x32xf32>
    %168 = arith.mulf %163, %167 : vector<16x32xf32>
    %169 = vector.broadcast %149 : vector<1x32xf32> to vector<16x32xf32>
    %170 = arith.mulf %168, %169 : vector<16x32xf32>
    %171 = vector.broadcast %150 : vector<1x32xf32> to vector<16x32xf32>
    %172 = arith.addf %170, %171 : vector<16x32xf32>
    %c0_71 = arith.constant 0 : index
    %c0_72 = arith.constant 0 : index
    %c0_73 = arith.constant 0 : index
    %c0_74 = arith.constant 0 : index
    %173 = vector.load %arg12[%c0_71, %c0_72, %c0_73, %c0_74] : memref<1x3x32x32xf32, #tpu.memory_space<vmem>>, vector<1x1x32x32xf32>
    %174 = vector.shape_cast %173 : vector<1x1x32x32xf32> to vector<32x32xf32>
    %c0_75 = arith.constant 0 : index
    %c0_76 = arith.constant 0 : index
    %c0_77 = arith.constant 0 : index
    %c0_78 = arith.constant 0 : index
    %175 = vector.load %arg13[%c0_75, %c0_76, %c0_77, %c0_78] : memref<1x3x1x32xf32, #tpu.memory_space<vmem>>, vector<1x1x1x32xf32>
    %176 = vector.shape_cast %175 : vector<1x1x1x32xf32> to vector<1x32xf32>
    %cst_79 = arith.constant dense<0.000000e+00> : vector<16x32xf32>
    %177 = tpu.matmul %172, %174, %cst_79 {dimension_numbers = #tpu.dot_dimension_numbers<[1], [0], [0], [1], [0, 0, 1, 1], [], []>} : vector<16x32xf32>, vector<32x32xf32>, vector<16x32xf32> -> vector<16x32xf32>
    %178 = vector.broadcast %176 : vector<1x32xf32> to vector<16x32xf32>
    %179 = arith.addf %177, %178 : vector<16x32xf32>
    %c0_80 = arith.constant 0 : index
    %c1_81 = arith.constant 1 : index
    %c0_82 = arith.constant 0 : index
    %c0_83 = arith.constant 0 : index
    %180 = vector.load %arg12[%c0_80, %c1_81, %c0_82, %c0_83] : memref<1x3x32x32xf32, #tpu.memory_space<vmem>>, vector<1x1x32x32xf32>
    %181 = vector.shape_cast %180 : vector<1x1x32x32xf32> to vector<32x32xf32>
    %c0_84 = arith.constant 0 : index
    %c1_85 = arith.constant 1 : index
    %c0_86 = arith.constant 0 : index
    %c0_87 = arith.constant 0 : index
    %182 = vector.load %arg13[%c0_84, %c1_85, %c0_86, %c0_87] : memref<1x3x1x32xf32, #tpu.memory_space<vmem>>, vector<1x1x1x32xf32>
    %183 = vector.shape_cast %182 : vector<1x1x1x32xf32> to vector<1x32xf32>
    %cst_88 = arith.constant dense<0.000000e+00> : vector<16x32xf32>
    %184 = tpu.matmul %172, %181, %cst_88 {dimension_numbers = #tpu.dot_dimension_numbers<[1], [0], [0], [1], [0, 0, 1, 1], [], []>} : vector<16x32xf32>, vector<32x32xf32>, vector<16x32xf32> -> vector<16x32xf32>
    %185 = vector.broadcast %183 : vector<1x32xf32> to vector<16x32xf32>
    %186 = arith.addf %184, %185 : vector<16x32xf32>
    %c0_89 = arith.constant 0 : index
    %c2_90 = arith.constant 2 : index
    %c0_91 = arith.constant 0 : index
    %c0_92 = arith.constant 0 : index
    %187 = vector.load %arg12[%c0_89, %c2_90, %c0_91, %c0_92] : memref<1x3x32x32xf32, #tpu.memory_space<vmem>>, vector<1x1x32x32xf32>
    %188 = vector.shape_cast %187 : vector<1x1x32x32xf32> to vector<32x32xf32>
    %c0_93 = arith.constant 0 : index
    %c2_94 = arith.constant 2 : index
    %c0_95 = arith.constant 0 : index
    %c0_96 = arith.constant 0 : index
    %189 = vector.load %arg13[%c0_93, %c2_94, %c0_95, %c0_96] : memref<1x3x1x32xf32, #tpu.memory_space<vmem>>, vector<1x1x1x32xf32>
    %190 = vector.shape_cast %189 : vector<1x1x1x32xf32> to vector<1x32xf32>
    %cst_97 = arith.constant dense<0.000000e+00> : vector<16x32xf32>
    %191 = tpu.matmul %172, %188, %cst_97 {dimension_numbers = #tpu.dot_dimension_numbers<[1], [0], [0], [1], [0, 0, 1, 1], [], []>} : vector<16x32xf32>, vector<32x32xf32>, vector<16x32xf32> -> vector<16x32xf32>
    %192 = vector.broadcast %190 : vector<1x32xf32> to vector<16x32xf32>
    %193 = arith.addf %191, %192 : vector<16x32xf32>
    %cst_98 = arith.constant 0.000000e+00 : f32
    %194 = vector.broadcast %cst_98 : f32 to vector<16x32xf32>
    %195 = vector.broadcast %15 : vector<1x32xf32> to vector<16x32xf32>
    %196 = arith.mulf %179, %195 : vector<16x32xf32>
    %cst_99 = arith.constant dense<0.000000e+00> : vector<16x16xf32>
    %197 = tpu.matmul %196, %186, %cst_99 {dimension_numbers = #tpu.dot_dimension_numbers<[1], [1], [0], [0], [0, 0, 1, 0], [], []>} : vector<16x32xf32>, vector<16x32xf32>, vector<16x16xf32> -> vector<16x16xf32>
    %cst_100 = arith.constant 0.353553385 : f32
    %198 = vector.broadcast %cst_100 : f32 to vector<16x16xf32>
    %199 = arith.mulf %197, %198 : vector<16x16xf32>
    %200 = vector.broadcast %5 : vector<1x16xf32> to vector<16x16xf32>
    %201 = arith.addf %199, %200 : vector<16x16xf32>
    %cst_101 = arith.constant dense<0xFF800000> : vector<16xf32>
    %202 = vector.multi_reduction <maximumf>, %201, %cst_101 [1] : vector<16x16xf32> to vector<16xf32>
    %203 = vector.shape_cast %202 : vector<16xf32> to vector<16x1xf32>
    %204 = vector.broadcast %203 : vector<16x1xf32> to vector<16x16xf32>
    %205 = arith.subf %201, %204 : vector<16x16xf32>
    %206 = math.exp %205 : vector<16x16xf32>
    %cst_102 = arith.constant dense<0.000000e+00> : vector<16xf32>
    %207 = vector.multi_reduction <add>, %206, %cst_102 [1] : vector<16x16xf32> to vector<16xf32>
    %208 = vector.shape_cast %207 : vector<16xf32> to vector<16x1xf32>
    %209 = tpu.reciprocal %208 {approx = true} : vector<16x1xf32> -> vector<16x1xf32>
    %210 = vector.broadcast %209 : vector<16x1xf32> to vector<16x16xf32>
    %211 = arith.mulf %206, %210 : vector<16x16xf32>
    %212 = vector.broadcast %15 : vector<1x32xf32> to vector<16x32xf32>
    %213 = arith.mulf %193, %212 : vector<16x32xf32>
    %cst_103 = arith.constant dense<0.000000e+00> : vector<16x32xf32>
    %214 = tpu.matmul %211, %213, %cst_103 {dimension_numbers = #tpu.dot_dimension_numbers<[1], [0], [0], [1], [0, 0, 1, 1], [], []>} : vector<16x16xf32>, vector<16x32xf32>, vector<16x32xf32> -> vector<16x32xf32>
    %215 = arith.addf %194, %214 : vector<16x32xf32>
    %216 = vector.broadcast %22 : vector<1x32xf32> to vector<16x32xf32>
    %217 = arith.mulf %179, %216 : vector<16x32xf32>
    %cst_104 = arith.constant dense<0.000000e+00> : vector<16x16xf32>
    %218 = tpu.matmul %217, %186, %cst_104 {dimension_numbers = #tpu.dot_dimension_numbers<[1], [1], [0], [0], [0, 0, 1, 0], [], []>} : vector<16x32xf32>, vector<16x32xf32>, vector<16x16xf32> -> vector<16x16xf32>
    %cst_105 = arith.constant 0.353553385 : f32
    %219 = vector.broadcast %cst_105 : f32 to vector<16x16xf32>
    %220 = arith.mulf %218, %219 : vector<16x16xf32>
    %221 = vector.broadcast %5 : vector<1x16xf32> to vector<16x16xf32>
    %222 = arith.addf %220, %221 : vector<16x16xf32>
    %cst_106 = arith.constant dense<0xFF800000> : vector<16xf32>
    %223 = vector.multi_reduction <maximumf>, %222, %cst_106 [1] : vector<16x16xf32> to vector<16xf32>
    %224 = vector.shape_cast %223 : vector<16xf32> to vector<16x1xf32>
    %225 = vector.broadcast %224 : vector<16x1xf32> to vector<16x16xf32>
    %226 = arith.subf %222, %225 : vector<16x16xf32>
    %227 = math.exp %226 : vector<16x16xf32>
    %cst_107 = arith.constant dense<0.000000e+00> : vector<16xf32>
    %228 = vector.multi_reduction <add>, %227, %cst_107 [1] : vector<16x16xf32> to vector<16xf32>
    %229 = vector.shape_cast %228 : vector<16xf32> to vector<16x1xf32>
    %230 = tpu.reciprocal %229 {approx = true} : vector<16x1xf32> -> vector<16x1xf32>
    %231 = vector.broadcast %230 : vector<16x1xf32> to vector<16x16xf32>
    %232 = arith.mulf %227, %231 : vector<16x16xf32>
    %233 = vector.broadcast %22 : vector<1x32xf32> to vector<16x32xf32>
    %234 = arith.mulf %193, %233 : vector<16x32xf32>
    %cst_108 = arith.constant dense<0.000000e+00> : vector<16x32xf32>
    %235 = tpu.matmul %232, %234, %cst_108 {dimension_numbers = #tpu.dot_dimension_numbers<[1], [0], [0], [1], [0, 0, 1, 1], [], []>} : vector<16x16xf32>, vector<16x32xf32>, vector<16x32xf32> -> vector<16x32xf32>
    %236 = arith.addf %215, %235 : vector<16x32xf32>
    %237 = vector.broadcast %29 : vector<1x32xf32> to vector<16x32xf32>
    %238 = arith.mulf %179, %237 : vector<16x32xf32>
    %cst_109 = arith.constant dense<0.000000e+00> : vector<16x16xf32>
    %239 = tpu.matmul %238, %186, %cst_109 {dimension_numbers = #tpu.dot_dimension_numbers<[1], [1], [0], [0], [0, 0, 1, 0], [], []>} : vector<16x32xf32>, vector<16x32xf32>, vector<16x16xf32> -> vector<16x16xf32>
    %cst_110 = arith.constant 0.353553385 : f32
    %240 = vector.broadcast %cst_110 : f32 to vector<16x16xf32>
    %241 = arith.mulf %239, %240 : vector<16x16xf32>
    %242 = vector.broadcast %5 : vector<1x16xf32> to vector<16x16xf32>
    %243 = arith.addf %241, %242 : vector<16x16xf32>
    %cst_111 = arith.constant dense<0xFF800000> : vector<16xf32>
    %244 = vector.multi_reduction <maximumf>, %243, %cst_111 [1] : vector<16x16xf32> to vector<16xf32>
    %245 = vector.shape_cast %244 : vector<16xf32> to vector<16x1xf32>
    %246 = vector.broadcast %245 : vector<16x1xf32> to vector<16x16xf32>
    %247 = arith.subf %243, %246 : vector<16x16xf32>
    %248 = math.exp %247 : vector<16x16xf32>
    %cst_112 = arith.constant dense<0.000000e+00> : vector<16xf32>
    %249 = vector.multi_reduction <add>, %248, %cst_112 [1] : vector<16x16xf32> to vector<16xf32>
    %250 = vector.shape_cast %249 : vector<16xf32> to vector<16x1xf32>
    %251 = tpu.reciprocal %250 {approx = true} : vector<16x1xf32> -> vector<16x1xf32>
    %252 = vector.broadcast %251 : vector<16x1xf32> to vector<16x16xf32>
    %253 = arith.mulf %248, %252 : vector<16x16xf32>
    %254 = vector.broadcast %29 : vector<1x32xf32> to vector<16x32xf32>
    %255 = arith.mulf %193, %254 : vector<16x32xf32>
    %cst_113 = arith.constant dense<0.000000e+00> : vector<16x32xf32>
    %256 = tpu.matmul %253, %255, %cst_113 {dimension_numbers = #tpu.dot_dimension_numbers<[1], [0], [0], [1], [0, 0, 1, 1], [], []>} : vector<16x16xf32>, vector<16x32xf32>, vector<16x32xf32> -> vector<16x32xf32>
    %257 = arith.addf %236, %256 : vector<16x32xf32>
    %258 = vector.broadcast %36 : vector<1x32xf32> to vector<16x32xf32>
    %259 = arith.mulf %179, %258 : vector<16x32xf32>
    %cst_114 = arith.constant dense<0.000000e+00> : vector<16x16xf32>
    %260 = tpu.matmul %259, %186, %cst_114 {dimension_numbers = #tpu.dot_dimension_numbers<[1], [1], [0], [0], [0, 0, 1, 0], [], []>} : vector<16x32xf32>, vector<16x32xf32>, vector<16x16xf32> -> vector<16x16xf32>
    %cst_115 = arith.constant 0.353553385 : f32
    %261 = vector.broadcast %cst_115 : f32 to vector<16x16xf32>
    %262 = arith.mulf %260, %261 : vector<16x16xf32>
    %263 = vector.broadcast %5 : vector<1x16xf32> to vector<16x16xf32>
    %264 = arith.addf %262, %263 : vector<16x16xf32>
    %cst_116 = arith.constant dense<0xFF800000> : vector<16xf32>
    %265 = vector.multi_reduction <maximumf>, %264, %cst_116 [1] : vector<16x16xf32> to vector<16xf32>
    %266 = vector.shape_cast %265 : vector<16xf32> to vector<16x1xf32>
    %267 = vector.broadcast %266 : vector<16x1xf32> to vector<16x16xf32>
    %268 = arith.subf %264, %267 : vector<16x16xf32>
    %269 = math.exp %268 : vector<16x16xf32>
    %cst_117 = arith.constant dense<0.000000e+00> : vector<16xf32>
    %270 = vector.multi_reduction <add>, %269, %cst_117 [1] : vector<16x16xf32> to vector<16xf32>
    %271 = vector.shape_cast %270 : vector<16xf32> to vector<16x1xf32>
    %272 = tpu.reciprocal %271 {approx = true} : vector<16x1xf32> -> vector<16x1xf32>
    %273 = vector.broadcast %272 : vector<16x1xf32> to vector<16x16xf32>
    %274 = arith.mulf %269, %273 : vector<16x16xf32>
    %275 = vector.broadcast %36 : vector<1x32xf32> to vector<16x32xf32>
    %276 = arith.mulf %193, %275 : vector<16x32xf32>
    %cst_118 = arith.constant dense<0.000000e+00> : vector<16x32xf32>
    %277 = tpu.matmul %274, %276, %cst_118 {dimension_numbers = #tpu.dot_dimension_numbers<[1], [0], [0], [1], [0, 0, 1, 1], [], []>} : vector<16x16xf32>, vector<16x32xf32>, vector<16x32xf32> -> vector<16x32xf32>
    %278 = arith.addf %257, %277 : vector<16x32xf32>
    %c0_119 = arith.constant 0 : index
    %c0_120 = arith.constant 0 : index
    %c0_121 = arith.constant 0 : index
    %279 = vector.load %arg14[%c0_119, %c0_120, %c0_121] : memref<1x32x64xf32, #tpu.memory_space<vmem>>, vector<1x32x64xf32>
    %280 = vector.shape_cast %279 : vector<1x32x64xf32> to vector<32x64xf32>
    %c0_122 = arith.constant 0 : index
    %c0_123 = arith.constant 0 : index
    %c0_124 = arith.constant 0 : index
    %281 = vector.load %arg15[%c0_122, %c0_123, %c0_124] : memref<1x1x64xf32, #tpu.memory_space<vmem>>, vector<1x1x64xf32>
    %282 = vector.shape_cast %281 : vector<1x1x64xf32> to vector<1x64xf32>
    %cst_125 = arith.constant dense<0.000000e+00> : vector<16x64xf32>
    %283 = tpu.matmul %278, %280, %cst_125 {dimension_numbers = #tpu.dot_dimension_numbers<[1], [0], [0], [1], [0, 0, 1, 1], [], []>} : vector<16x32xf32>, vector<32x64xf32>, vector<16x64xf32> -> vector<16x64xf32>
    %284 = vector.broadcast %282 : vector<1x64xf32> to vector<16x64xf32>
    %285 = arith.addf %283, %284 : vector<16x64xf32>
    %cst_126 = arith.constant 5.000000e-01 : f32
    %286 = vector.broadcast %cst_126 : f32 to vector<16x64xf32>
    %287 = arith.mulf %285, %286 : vector<16x64xf32>
    %cst_127 = arith.constant 0.707106769 : f32
    %288 = vector.broadcast %cst_127 : f32 to vector<16x64xf32>
    %289 = arith.mulf %285, %288 : vector<16x64xf32>
    %290 = math.erf %289 : vector<16x64xf32>
    %cst_128 = arith.constant 1.000000e+00 : f32
    %291 = vector.broadcast %cst_128 : f32 to vector<16x64xf32>
    %292 = arith.addf %291, %290 : vector<16x64xf32>
    %293 = arith.mulf %287, %292 : vector<16x64xf32>
    %c0_129 = arith.constant 0 : index
    %c0_130 = arith.constant 0 : index
    %c0_131 = arith.constant 0 : index
    %294 = vector.load %arg16[%c0_129, %c0_130, %c0_131] : memref<1x64x32xf32, #tpu.memory_space<vmem>>, vector<1x64x32xf32>
    %295 = vector.shape_cast %294 : vector<1x64x32xf32> to vector<64x32xf32>
    %c0_132 = arith.constant 0 : index
    %c0_133 = arith.constant 0 : index
    %c0_134 = arith.constant 0 : index
    %296 = vector.load %arg17[%c0_132, %c0_133, %c0_134] : memref<1x1x32xf32, #tpu.memory_space<vmem>>, vector<1x1x32xf32>
    %297 = vector.shape_cast %296 : vector<1x1x32xf32> to vector<1x32xf32>
    %cst_135 = arith.constant dense<0.000000e+00> : vector<16x32xf32>
    %298 = tpu.matmul %293, %295, %cst_135 {dimension_numbers = #tpu.dot_dimension_numbers<[1], [0], [0], [1], [0, 0, 1, 1], [], []>} : vector<16x64xf32>, vector<64x32xf32>, vector<16x32xf32> -> vector<16x32xf32>
    %299 = vector.broadcast %297 : vector<1x32xf32> to vector<16x32xf32>
    %300 = arith.addf %298, %299 : vector<16x32xf32>
    %301 = arith.addf %300, %278 : vector<16x32xf32>
    %c0_136 = arith.constant 0 : index
    %c0_137 = arith.constant 0 : index
    %c0_138 = arith.constant 0 : index
    %302 = vector.load %arg18[%c0_136, %c0_137, %c0_138] : memref<1x1x32xf32, #tpu.memory_space<vmem>>, vector<1x1x32xf32>
    %303 = vector.shape_cast %302 : vector<1x1x32xf32> to vector<1x32xf32>
    %c0_139 = arith.constant 0 : index
    %c0_140 = arith.constant 0 : index
    %c0_141 = arith.constant 0 : index
    %304 = vector.load %arg19[%c0_139, %c0_140, %c0_141] : memref<1x1x32xf32, #tpu.memory_space<vmem>>, vector<1x1x32xf32>
    %305 = vector.shape_cast %304 : vector<1x1x32xf32> to vector<1x32xf32>
    %cst_142 = arith.constant dense<0.000000e+00> : vector<16xf32>
    %306 = vector.multi_reduction <add>, %301, %cst_142 [1] : vector<16x32xf32> to vector<16xf32>
    %307 = vector.shape_cast %306 : vector<16xf32> to vector<16x1xf32>
    %cst_143 = arith.constant 3.200000e+01 : f32
    %308 = vector.broadcast %cst_143 : f32 to vector<16x1xf32>
    %309 = arith.divf %307, %308 : vector<16x1xf32>
    %310 = vector.broadcast %309 : vector<16x1xf32> to vector<16x32xf32>
    %311 = arith.subf %301, %310 : vector<16x32xf32>
    %312 = arith.mulf %311, %311 : vector<16x32xf32>
    %cst_144 = arith.constant dense<0.000000e+00> : vector<16xf32>
    %313 = vector.multi_reduction <add>, %312, %cst_144 [1] : vector<16x32xf32> to vector<16xf32>
    %314 = vector.shape_cast %313 : vector<16xf32> to vector<16x1xf32>
    %cst_145 = arith.constant 3.200000e+01 : f32
    %315 = vector.broadcast %cst_145 : f32 to vector<16x1xf32>
    %316 = arith.divf %314, %315 : vector<16x1xf32>
    %317 = vector.broadcast %309 : vector<16x1xf32> to vector<16x32xf32>
    %318 = arith.subf %301, %317 : vector<16x32xf32>
    %cst_146 = arith.constant 9.99999996E-13 : f32
    %319 = vector.broadcast %cst_146 : f32 to vector<16x1xf32>
    %320 = arith.addf %316, %319 : vector<16x1xf32>
    %321 = math.rsqrt %320 : vector<16x1xf32>
    %322 = vector.broadcast %321 : vector<16x1xf32> to vector<16x32xf32>
    %323 = arith.mulf %318, %322 : vector<16x32xf32>
    %324 = vector.broadcast %303 : vector<1x32xf32> to vector<16x32xf32>
    %325 = arith.mulf %323, %324 : vector<16x32xf32>
    %326 = vector.broadcast %305 : vector<1x32xf32> to vector<16x32xf32>
    %327 = arith.addf %325, %326 : vector<16x32xf32>
    %c0_147 = arith.constant 0 : index
    %c0_148 = arith.constant 0 : index
    %c0_149 = arith.constant 0 : index
    %c0_150 = arith.constant 0 : index
    %328 = vector.load %arg20[%c0_147, %c0_148, %c0_149, %c0_150] : memref<1x1x16x32xf32, #tpu.memory_space<vmem>>, vector<1x1x16x32xf32>
    %329 = vector.shape_cast %328 : vector<1x1x16x32xf32> to vector<16x32xf32>
    %330 = vector.shape_cast %327 : vector<16x32xf32> to vector<1x1x16x32xf32>
    tpu.vector_store %arg20[%c0_147, %c0_148, %c0_149, %c0_150], %330 {strides = array<i32>} : memref<1x1x16x32xf32, #tpu.memory_space<vmem>>, vector<1x1x16x32xf32>,
    return
  }
  func.func @transform_0(%arg0: i32, %arg1: i32) -> (i32, i32, i32, i32) {
    %c0_i32 = arith.constant 0 : i32
    %c0_i32_0 = arith.constant 0 : i32
    %c0_i32_1 = arith.constant 0 : i32
    return %arg0, %arg1, %c0_i32, %c0_i32_0 : i32, i32, i32, i32
  }
  func.func @transform_1(%arg0: i32, %arg1: i32) -> (i32, i32, i32, i32) {
    %c1_i32 = arith.constant 1 : i32
    %0 = arith.subi %c1_i32, %arg0 : i32
    %c0_i32 = arith.constant 0 : i32
    %c0_i32_0 = arith.constant 0 : i32
    %c0_i32_1 = arith.constant 0 : i32
    return %0, %arg1, %c0_i32, %c0_i32_0 : i32, i32, i32, i32
  }
  func.func @transform_2(%arg0: i32, %arg1: i32) -> (i32, i32, i32, i32) {
    %c0_i32 = arith.constant 0 : i32
    %c0_i32_0 = arith.constant 0 : i32
    %c0_i32_1 = arith.constant 0 : i32
    return %arg0, %arg1, %c0_i32, %c0_i32_0 : i32, i32, i32, i32
  }
  func.func @transform_3(%arg0: i32, %arg1: i32) -> (i32, i32, i32, i32) {
    %c1_i32 = arith.constant 1 : i32
    %0 = arith.subi %c1_i32, %arg0 : i32
    %c0_i32 = arith.constant 0 : i32
    %c0_i32_0 = arith.constant 0 : i32
    %c0_i32_1 = arith.constant 0 : i32
    return %0, %arg1, %c0_i32, %c0_i32_0 : i32, i32, i32, i32
  }
  func.func @transform_4(%arg0: i32, %arg1: i32) -> (i32, i32, i32) {
    %c0_i32 = arith.constant 0 : i32
    %c0_i32_0 = arith.constant 0 : i32
    %c0_i32_1 = arith.constant 0 : i32
    %c0_i32_2 = arith.constant 0 : i32
    return %c0_i32, %c0_i32_0, %c0_i32_1 : i32, i32, i32
  }
  func.func @transform_5(%arg0: i32, %arg1: i32) -> (i32, i32, i32) {
    %c0_i32 = arith.constant 0 : i32
    %c0_i32_0 = arith.constant 0 : i32
    %c0_i32_1 = arith.constant 0 : i32
    %c0_i32_2 = arith.constant 0 : i32
    return %c0_i32, %c0_i32_0, %c0_i32_1 : i32, i32, i32
  }
  func.func @transform_6(%arg0: i32, %arg1: i32) -> (i32, i32) {
    %c0_i32 = arith.constant 0 : i32
    %c0_i32_0 = arith.constant 0 : i32
    %c0_i32_1 = arith.constant 0 : i32
    return %c0_i32, %c0_i32_0 : i32, i32
  }
  func.func @transform_7(%arg0: i32, %arg1: i32) -> (i32, i32) {
    %c0_i32 = arith.constant 0 : i32
    %c0_i32_0 = arith.constant 0 : i32
    %c0_i32_1 = arith.constant 0 : i32
    return %c0_i32, %c0_i32_0 : i32, i32
  }
  func.func @transform_8(%arg0: i32, %arg1: i32) -> (i32, i32) {
    %c0_i32 = arith.constant 0 : i32
    %c0_i32_0 = arith.constant 0 : i32
    %c0_i32_1 = arith.constant 0 : i32
    return %c0_i32, %c0_i32_0 : i32, i32
  }
  func.func @transform_9(%arg0: i32, %arg1: i32) -> (i32, i32) {
    %c0_i32 = arith.constant 0 : i32
    %c0_i32_0 = arith.constant 0 : i32
    %c0_i32_1 = arith.constant 0 : i32
    return %c0_i32, %c0_i32_0 : i32, i32
  }
  func.func @transform_10(%arg0: i32, %arg1: i32) -> (i32, i32, i32, i32) {
    %c0_i32 = arith.constant 0 : i32
    %c0_i32_0 = arith.constant 0 : i32
    %c0_i32_1 = arith.constant 0 : i32
    %c0_i32_2 = arith.constant 0 : i32
    return %arg0, %c0_i32, %c0_i32_0, %c0_i32_1 : i32, i32, i32, i32
  }
  func.func @transform_11(%arg0: i32, %arg1: i32) -> (i32, i32, i32, i32) {
    %c0_i32 = arith.constant 0 : i32
    %c0_i32_0 = arith.constant 0 : i32
    %c0_i32_1 = arith.constant 0 : i32
    %c0_i32_2 = arith.constant 0 : i32
    return %arg0, %c0_i32, %c0_i32_0, %c0_i32_1 : i32, i32, i32, i32
  }
  func.func @transform_12(%arg0: i32, %arg1: i32) -> (i32, i32, i32) {
    %c0_i32 = arith.constant 0 : i32
    %c0_i32_0 = arith.constant 0 : i32
    %c0_i32_1 = arith.constant 0 : i32
    return %arg0, %c0_i32, %c0_i32_0 : i32, i32, i32
  }
  func.func @transform_13(%arg0: i32, %arg1: i32) -> (i32, i32, i32) {
    %c0_i32 = arith.constant 0 : i32
    %c0_i32_0 = arith.constant 0 : i32
    %c0_i32_1 = arith.constant 0 : i32
    return %arg0, %c0_i32, %c0_i32_0 : i32, i32, i32
  }
  func.func @transform_14(%arg0: i32, %arg1: i32) -> (i32, i32, i32) {
    %c0_i32 = arith.constant 0 : i32
    %c0_i32_0 = arith.constant 0 : i32
    %c0_i32_1 = arith.constant 0 : i32
    return %arg0, %c0_i32, %c0_i32_0 : i32, i32, i32
  }
  func.func @transform_15(%arg0: i32, %arg1: i32) -> (i32, i32, i32) {
    %c0_i32 = arith.constant 0 : i32
    %c0_i32_0 = arith.constant 0 : i32
    %c0_i32_1 = arith.constant 0 : i32
    return %arg0, %c0_i32, %c0_i32_0 : i32, i32, i32
  }
  func.func @transform_16(%arg0: i32, %arg1: i32) -> (i32, i32, i32) {
    %c0_i32 = arith.constant 0 : i32
    %c0_i32_0 = arith.constant 0 : i32
    %c0_i32_1 = arith.constant 0 : i32
    return %arg0, %c0_i32, %c0_i32_0 : i32, i32, i32
  }
  func.func @transform_17(%arg0: i32, %arg1: i32) -> (i32, i32, i32) {
    %c0_i32 = arith.constant 0 : i32
    %c0_i32_0 = arith.constant 0 : i32
    %c0_i32_1 = arith.constant 0 : i32
    return %arg0, %c0_i32, %c0_i32_0 : i32, i32, i32
  }
  func.func @transform_18(%arg0: i32, %arg1: i32) -> (i32, i32, i32, i32) {
    %c0_i32 = arith.constant 0 : i32
    %c0_i32_0 = arith.constant 0 : i32
    %c0_i32_1 = arith.constant 0 : i32
    return %arg0, %arg1, %c0_i32, %c0_i32_0 : i32, i32, i32, i32
  }
}

</mosaic_0001>

<llo_original>
// kernel: lxmert_x_layer.1
$region0: #{lxmert_x_layer.1}
  #allocation0 [shape = 'u32[]', space=smem, size = 0x4, offset = 0x4, fixed_abs, tag = 'smem constant byte address 0x4 - core index']
  #allocation1 [shape = 'u32[72,128]{1,0:T(1,128)}', space=vmem, size = 0x9000, scoped, tag = 'internal scratch']
  %s0 = inlined_call_operand.vmem [shape: f32[2,2,16,32], index: 0, kind: input, shape index: {}, may-alias: {0,1}]
  %s1 = inlined_call_operand.vmem [shape: f32[2,2,16,32], index: 1, kind: input, shape index: {}, may-alias: {0,1}]
  %s2 = inlined_call_operand.vmem [shape: f32[2,2,1,16], index: 2, kind: input, shape index: {}, may-alias: {2,3}]
  %s3 = inlined_call_operand.vmem [shape: f32[2,2,1,16], index: 3, kind: input, shape index: {}, may-alias: {2,3}]
  %s4 = inlined_call_operand.hbm [shape: f32[3,32,32], index: 4, kind: input, shape index: {}]
  %s5 = inlined_call_operand.vmem [shape: f32[3,1,32], index: 5, kind: input, shape index: {}]
  %s6 = inlined_call_operand.hbm [shape: f32[32,32], index: 6, kind: input, shape index: {}]
  %s7 = inlined_call_operand.vmem [shape: f32[1,32], index: 7, kind: input, shape index: {}]
  %s8 = inlined_call_operand.vmem [shape: f32[1,32], index: 8, kind: input, shape index: {}]
  %s9 = inlined_call_operand.vmem [shape: f32[1,32], index: 9, kind: input, shape index: {}]
  %s10 = inlined_call_operand.vmem [shape: f32[2,3,32,32], index: 10, kind: input, shape index: {}]
  %s11 = inlined_call_operand.vmem [shape: f32[2,3,1,32], index: 11, kind: input, shape index: {}]
  %s12 = inlined_call_operand.vmem [shape: f32[2,32,64], index: 12, kind: input, shape index: {}]
  %s13 = inlined_call_operand.vmem [shape: f32[2,1,64], index: 13, kind: input, shape index: {}]
  %s14 = inlined_call_operand.vmem [shape: f32[2,64,32], index: 14, kind: input, shape index: {}]
  %s15 = inlined_call_operand.vmem [shape: f32[2,1,32], index: 15, kind: input, shape index: {}]
  %s16 = inlined_call_operand.vmem [shape: f32[2,1,32], index: 16, kind: input, shape index: {}]
  %s17 = inlined_call_operand.vmem [shape: f32[2,1,32], index: 17, kind: input, shape index: {}]
  %s18 = inlined_call_operand.vmem [shape: f32[2,2,16,32], index: 18, kind: output, shape index: {}]
  %s19 = sld [smem:[#allocation0]]
  $region113: #{lxmert_x_layer.1} parent=0
    _
  %s21 = ssub.s32 1, %s19
  %s22 = scalar_select 0, %s21, %s19
  $region1: #{lxmert_x_layer.1} parent=0
    #allocation2 [shape = 'u8[49152]{0}', space=vmem, size = 0xc000, scoped, tag = 'input window, operand 4, single buffered']
    #allocation3 [shape = 's32[2]{0}', space=sflag, size = 0x8, scoped, tag = 'scoped memory for lxmert_x_layer.1']
    #allocation4 [shape = 'u8[16384]{0}', space=vmem, size = 0x4000, scoped, tag = 'input window, operand 6, single buffered']
    #allocation5 [shape = 's32[1]{0}', space=sflag, size = 0x4, scoped, tag = 'scoped memory for lxmert_x_layer.1']
    %23 = vsyncpa [#allocation3], 0
    %24 = vsyncpa [#allocation5], 0
    loop: start=0, step=1, limit=6
    $region2: #{lxmert_x_layer.1} parent=1 // loop_pre_header
      _
    $region3: #{lxmert_x_layer.1} parent=1 // loop_header
      %s26 = sphi 0, %s30
      %p27 = scmp.ge.s32.totalorder %s26, 6
      %s33 = sphi 0, %s45
      %s34 = sphi 0, %s41
      %s35 = sphi 0, %s33
      %s36 = sphi 0, %s34
      %s37 = sphi 0, %s35
      %s38 = sphi 0, %s36
      %s50 = sphi 0, %s52
      %s53 = sphi 0, %s50
      %s54 = sphi 0, %s53
      %s70 = sphi 0, %s54
      %s80 = sphi 0, %s82
      %s83 = sphi 0, %s80
      %s84 = sphi 0, %s83
      %s100 = sphi 0, %s84
      %s108 = sphi 0, %s110
      %s111 = sphi 0, %s108
      %s112 = sphi 0, %s111
      %s128 = sphi 0, %s112
      %s138 = sphi 0, %s140
      %s141 = sphi 0, %s138
      %s142 = sphi 0, %s141
      %s158 = sphi 0, %s142
      %s162 = sphi 0, %s162
      %s164 = sphi 0, %s162
      %s165 = sphi 0, %s164
      %s179 = sphi 0, %s165
      %s183 = sphi 0, %s183
      %s185 = sphi 0, %s183
      %s186 = sphi 0, %s185
      %s200 = sphi 0, %s186
      %s204 = sphi 0, %s204
      %s206 = sphi 0, %s204
      %s207 = sphi 0, %s206
      %s221 = sphi 0, %s207
      %s225 = sphi 0, %s225
      %s227 = sphi 0, %s225
      %s228 = sphi 0, %s227
      %s242 = sphi 0, %s228
      %s246 = sphi 0, %s246
      %s248 = sphi 0, %s246
      %s249 = sphi 0, %s248
      %s263 = sphi 0, %s249
      %s267 = sphi 0, %s267
      %s269 = sphi 0, %s267
      %s270 = sphi 0, %s269
      %s284 = sphi 0, %s270
      %s290 = sphi 0, %s292
      %s293 = sphi 0, %s290
      %s294 = sphi 0, %s293
      %s310 = sphi 0, %s294
      %s316 = sphi 0, %s318
      %s319 = sphi 0, %s316
      %s320 = sphi 0, %s319
      %s336 = sphi 0, %s320
      %s342 = sphi 0, %s344
      %s345 = sphi 0, %s342
      %s346 = sphi 0, %s345
      %s362 = sphi 0, %s346
      %s368 = sphi 0, %s370
      %s371 = sphi 0, %s368
      %s372 = sphi 0, %s371
      %s388 = sphi 0, %s372
      %s394 = sphi 0, %s396
      %s397 = sphi 0, %s394
      %s398 = sphi 0, %s397
      %s414 = sphi 0, %s398
      %s420 = sphi 0, %s422
      %s423 = sphi 0, %s420
      %s424 = sphi 0, %s423
      %s440 = sphi 0, %s424
      %s446 = sphi 0, %s448
      %s449 = sphi 0, %s446
      %s450 = sphi 0, %s449
      %s466 = sphi 0, %s450
      %s472 = sphi 0, %s474
      %s475 = sphi 0, %s472
      %s476 = sphi 0, %s475
      %s492 = sphi 0, %s476
      %s500 = sphi 0, %s502
      %s503 = sphi 0, %s500
      %s504 = sphi 0, %s503
      %s520 = sphi 0, %s504
    $region4: #{lxmert_x_layer.1} parent=1 // loop_header_branch
      %29 = sbr.rel (%p27) target = $region8
    $region5: #{lxmert_x_layer.1} parent=1 // loop_body
      %s31 = ssub.s32 %s26, 1
      %s32 = ssub.s32 %s26, 2
      %s39 = sadd.s32 1, %s34
      %p40 = scmp.ge.s32.totalorder %s39, 2
      %s41 = scalar_select %p40, 0, %s39
      %s42 = sadd.s32 1, %s33
      %s43 = scalar_select %p40, %s42, %s33
      %p44 = scmp.ge.s32.totalorder %s43, 2
      %s45 = scalar_select %p44, 0, %s43
      %s46 = ssub.s32 %s33, %s45
      %s47 = ssub.s32 %s34, %s41
      %s48 = sor.u32 %s46, %s47
      %p49 = scmp.eq.s32.totalorder %s48, 0
      %s51 = sadd.s32 %s50, 1
      %s52 = scalar_select %p49, %s50, %s51
      %p55 = pneg %p49
      %p56 = scmp.eq.s32.totalorder %s26, 3
      %p57 = por %p55, %p56
      %p58 = scmp.ne.s32.totalorder %s50, %s53
      %p59 = scmp.eq.s32.totalorder %s26, 0
      %p60 = por %p58, %p59
      %p61 = scmp.ne.s32.totalorder %s50, %s53
      %p62 = scmp.eq.s32.totalorder %s31, 3
      %p63 = por %p61, %p62
      %p64 = scmp.ne.s32.totalorder %s53, %s54
      %p65 = scmp.eq.s32.totalorder %s31, 0
      %p66 = por %p64, %p65
      %p67 = scmp.ne.s32.totalorder %s53, %s54
      %p68 = scmp.eq.s32.totalorder %s32, 3
      %p69 = por %p67, %p68
      %p71 = scmp.ne.s32.totalorder %s54, %s70
      %p72 = scmp.eq.s32.totalorder %s32, 0
      %p73 = por %p71, %p72
      %s74 = ssub.s32 1, %s33
      %s75 = ssub.s32 1, %s45
      %s76 = ssub.s32 %s74, %s75
      %s77 = ssub.s32 %s34, %s41
      %s78 = sor.u32 %s76, %s77
      %p79 = scmp.eq.s32.totalorder %s78, 0
      %s81 = sadd.s32 %s80, 1
      %s82 = scalar_select %p79, %s80, %s81
      %p85 = pneg %p79
      %p86 = scmp.eq.s32.totalorder %s26, 3
      %p87 = por %p85, %p86
      %p88 = scmp.ne.s32.totalorder %s80, %s83
      %p89 = scmp.eq.s32.totalorder %s26, 0
      %p90 = por %p88, %p89
      %p91 = scmp.ne.s32.totalorder %s80, %s83
      %p92 = scmp.eq.s32.totalorder %s31, 3
      %p93 = por %p91, %p92
      %p94 = scmp.ne.s32.totalorder %s83, %s84
      %p95 = scmp.eq.s32.totalorder %s31, 0
      %p96 = por %p94, %p95
      %p97 = scmp.ne.s32.totalorder %s83, %s84
      %p98 = scmp.eq.s32.totalorder %s32, 3
      %p99 = por %p97, %p98
      %p101 = scmp.ne.s32.totalorder %s84, %s100
      %p102 = scmp.eq.s32.totalorder %s32, 0
      %p103 = por %p101, %p102
      %s104 = ssub.s32 %s33, %s45
      %s105 = ssub.s32 %s34, %s41
      %s106 = sor.u32 %s104, %s105
      %p107 = scmp.eq.s32.totalorder %s106, 0
      %s109 = sadd.s32 %s108, 1
      %s110 = scalar_select %p107, %s108, %s109
      %p113 = pneg %p107
      %p114 = scmp.eq.s32.totalorder %s26, 3
      %p115 = por %p113, %p114
      %p116 = scmp.ne.s32.totalorder %s108, %s111
      %p117 = scmp.eq.s32.totalorder %s26, 0
      %p118 = por %p116, %p117
      %p119 = scmp.ne.s32.totalorder %s108, %s111
      %p120 = scmp.eq.s32.totalorder %s31, 3
      %p121 = por %p119, %p120
      %p122 = scmp.ne.s32.totalorder %s111, %s112
      %p123 = scmp.eq.s32.totalorder %s31, 0
      %p124 = por %p122, %p123
      %p125 = scmp.ne.s32.totalorder %s111, %s112
      %p126 = scmp.eq.s32.totalorder %s32, 3
      %p127 = por %p125, %p126
      %p129 = scmp.ne.s32.totalorder %s112, %s128
      %p130 = scmp.eq.s32.totalorder %s32, 0
      %p131 = por %p129, %p130
      %s132 = ssub.s32 1, %s33
      %s133 = ssub.s32 1, %s45
      %s134 = ssub.s32 %s132, %s133
      %s135 = ssub.s32 %s34, %s41
      %s136 = sor.u32 %s134, %s135
      %p137 = scmp.eq.s32.totalorder %s136, 0
      %s139 = sadd.s32 %s138, 1
      %s140 = scalar_select %p137, %s138, %s139
      %p143 = pneg %p137
      %p144 = scmp.eq.s32.totalorder %s26, 3
      %p145 = por %p143, %p144
      %p146 = scmp.ne.s32.totalorder %s138, %s141
      %p147 = scmp.eq.s32.totalorder %s26, 0
      %p148 = por %p146, %p147
      %p149 = scmp.ne.s32.totalorder %s138, %s141
      %p150 = scmp.eq.s32.totalorder %s31, 3
      %p151 = por %p149, %p150
      %p152 = scmp.ne.s32.totalorder %s141, %s142
      %p153 = scmp.eq.s32.totalorder %s31, 0
      %p154 = por %p152, %p153
      %p155 = scmp.ne.s32.totalorder %s141, %s142
      %p156 = scmp.eq.s32.totalorder %s32, 3
      %p157 = por %p155, %p156
      %p159 = scmp.ne.s32.totalorder %s142, %s158
      %p160 = scmp.eq.s32.totalorder %s32, 0
      %p161 = por %p159, %p160
      %s163 = sadd.s32 %s162, 1
      %p166 = scmp.eq.s32.totalorder %s26, 3
      %p167 = scmp.ne.s32.totalorder %s162, %s164
      %p168 = scmp.eq.s32.totalorder %s26, 0
      %p169 = por %p167, %p168
      %p170 = scmp.ne.s32.totalorder %s162, %s164
      %p171 = scmp.eq.s32.totalorder %s31, 3
      %p172 = por %p170, %p171
      %p173 = scmp.ne.s32.totalorder %s164, %s165
      %p174 = scmp.eq.s32.totalorder %s31, 0
      %p175 = por %p173, %p174
      %p176 = scmp.ne.s32.totalorder %s164, %s165
      %p177 = scmp.eq.s32.totalorder %s32, 3
      %p178 = por %p176, %p177
      %p180 = scmp.ne.s32.totalorder %s165, %s179
      %p181 = scmp.eq.s32.totalorder %s32, 0
      %p182 = por %p180, %p181
      %s184 = sadd.s32 %s183, 1
      %p187 = scmp.eq.s32.totalorder %s26, 3
      %p188 = scmp.ne.s32.totalorder %s183, %s185
      %p189 = scmp.eq.s32.totalorder %s26, 0
      %p190 = por %p188, %p189
      %p191 = scmp.ne.s32.totalorder %s183, %s185
      %p192 = scmp.eq.s32.totalorder %s31, 3
      %p193 = por %p191, %p192
      %p194 = scmp.ne.s32.totalorder %s185, %s186
      %p195 = scmp.eq.s32.totalorder %s31, 0
      %p196 = por %p194, %p195
      %p197 = scmp.ne.s32.totalorder %s185, %s186
      %p198 = scmp.eq.s32.totalorder %s32, 3
      %p199 = por %p197, %p198
      %p201 = scmp.ne.s32.totalorder %s186, %s200
      %p202 = scmp.eq.s32.totalorder %s32, 0
      %p203 = por %p201, %p202
      %s205 = sadd.s32 %s204, 1
      %p208 = scmp.eq.s32.totalorder %s26, 3
      %p209 = scmp.ne.s32.totalorder %s204, %s206
      %p210 = scmp.eq.s32.totalorder %s26, 0
      %p211 = por %p209, %p210
      %p212 = scmp.ne.s32.totalorder %s204, %s206
      %p213 = scmp.eq.s32.totalorder %s31, 3
      %p214 = por %p212, %p213
      %p215 = scmp.ne.s32.totalorder %s206, %s207
      %p216 = scmp.eq.s32.totalorder %s31, 0
      %p217 = por %p215, %p216
      %p218 = scmp.ne.s32.totalorder %s206, %s207
      %p219 = scmp.eq.s32.totalorder %s32, 3
      %p220 = por %p218, %p219
      %p222 = scmp.ne.s32.totalorder %s207, %s221
      %p223 = scmp.eq.s32.totalorder %s32, 0
      %p224 = por %p222, %p223
      %s226 = sadd.s32 %s225, 1
      %p229 = scmp.eq.s32.totalorder %s26, 3
      %p230 = scmp.ne.s32.totalorder %s225, %s227
      %p231 = scmp.eq.s32.totalorder %s26, 0
      %p232 = por %p230, %p231
      %p233 = scmp.ne.s32.totalorder %s225, %s227
      %p234 = scmp.eq.s32.totalorder %s31, 3
      %p235 = por %p233, %p234
      %p236 = scmp.ne.s32.totalorder %s227, %s228
      %p237 = scmp.eq.s32.totalorder %s31, 0
      %p238 = por %p236, %p237
      %p239 = scmp.ne.s32.totalorder %s227, %s228
      %p240 = scmp.eq.s32.totalorder %s32, 3
      %p241 = por %p239, %p240
      %p243 = scmp.ne.s32.totalorder %s228, %s242
      %p244 = scmp.eq.s32.totalorder %s32, 0
      %p245 = por %p243, %p244
      %s247 = sadd.s32 %s246, 1
      %p250 = scmp.eq.s32.totalorder %s26, 3
      %p251 = scmp.ne.s32.totalorder %s246, %s248
      %p252 = scmp.eq.s32.totalorder %s26, 0
      %p253 = por %p251, %p252
      %p254 = scmp.ne.s32.totalorder %s246, %s248
      %p255 = scmp.eq.s32.totalorder %s31, 3
      %p256 = por %p254, %p255
      %p257 = scmp.ne.s32.totalorder %s248, %s249
      %p258 = scmp.eq.s32.totalorder %s31, 0
      %p259 = por %p257, %p258
      %p260 = scmp.ne.s32.totalorder %s248, %s249
      %p261 = scmp.eq.s32.totalorder %s32, 3
      %p262 = por %p260, %p261
      %p264 = scmp.ne.s32.totalorder %s249, %s263
      %p265 = scmp.eq.s32.totalorder %s32, 0
      %p266 = por %p264, %p265
      %s268 = sadd.s32 %s267, 1
      %p271 = scmp.eq.s32.totalorder %s26, 3
      %p272 = scmp.ne.s32.totalorder %s267, %s269
      %p273 = scmp.eq.s32.totalorder %s26, 0
      %p274 = por %p272, %p273
      %p275 = scmp.ne.s32.totalorder %s267, %s269
      %p276 = scmp.eq.s32.totalorder %s31, 3
      %p277 = por %p275, %p276
      %p278 = scmp.ne.s32.totalorder %s269, %s270
      %p279 = scmp.eq.s32.totalorder %s31, 0
      %p280 = por %p278, %p279
      %p281 = scmp.ne.s32.totalorder %s269, %s270
      %p282 = scmp.eq.s32.totalorder %s32, 3
      %p283 = por %p281, %p282
      %p285 = scmp.ne.s32.totalorder %s270, %s284
      %p286 = scmp.eq.s32.totalorder %s32, 0
      %p287 = por %p285, %p286
      %s288 = ssub.s32 %s33, %s45
      %p289 = scmp.eq.s32.totalorder %s288, 0
      %s291 = sadd.s32 %s290, 1
      %s292 = scalar_select %p289, %s290, %s291
      %p295 = pneg %p289
      %p296 = scmp.eq.s32.totalorder %s26, 3
      %p297 = por %p295, %p296
      %p298 = scmp.ne.s32.totalorder %s290, %s293
      %p299 = scmp.eq.s32.totalorder %s26, 0
      %p300 = por %p298, %p299
      %p301 = scmp.ne.s32.totalorder %s290, %s293
      %p302 = scmp.eq.s32.totalorder %s31, 3
      %p303 = por %p301, %p302
      %p304 = scmp.ne.s32.totalorder %s293, %s294
      %p305 = scmp.eq.s32.totalorder %s31, 0
      %p306 = por %p304, %p305
      %p307 = scmp.ne.s32.totalorder %s293, %s294
      %p308 = scmp.eq.s32.totalorder %s32, 3
      %p309 = por %p307, %p308
      %p311 = scmp.ne.s32.totalorder %s294, %s310
      %p312 = scmp.eq.s32.totalorder %s32, 0
      %p313 = por %p311, %p312
      %s314 = ssub.s32 %s33, %s45
      %p315 = scmp.eq.s32.totalorder %s314, 0
      %s317 = sadd.s32 %s316, 1
      %s318 = scalar_select %p315, %s316, %s317
      %p321 = pneg %p315
      %p322 = scmp.eq.s32.totalorder %s26, 3
      %p323 = por %p321, %p322
      %p324 = scmp.ne.s32.totalorder %s316, %s319
      %p325 = scmp.eq.s32.totalorder %s26, 0
      %p326 = por %p324, %p325
      %p327 = scmp.ne.s32.totalorder %s316, %s319
      %p328 = scmp.eq.s32.totalorder %s31, 3
      %p329 = por %p327, %p328
      %p330 = scmp.ne.s32.totalorder %s319, %s320
      %p331 = scmp.eq.s32.totalorder %s31, 0
      %p332 = por %p330, %p331
      %p333 = scmp.ne.s32.totalorder %s319, %s320
      %p334 = scmp.eq.s32.totalorder %s32, 3
      %p335 = por %p333, %p334
      %p337 = scmp.ne.s32.totalorder %s320, %s336
      %p338 = scmp.eq.s32.totalorder %s32, 0
      %p339 = por %p337, %p338
      %s340 = ssub.s32 %s33, %s45
      %p341 = scmp.eq.s32.totalorder %s340, 0
      %s343 = sadd.s32 %s342, 1
      %s344 = scalar_select %p341, %s342, %s343
      %p347 = pneg %p341
      %p348 = scmp.eq.s32.totalorder %s26, 3
      %p349 = por %p347, %p348
      %p350 = scmp.ne.s32.totalorder %s342, %s345
      %p351 = scmp.eq.s32.totalorder %s26, 0
      %p352 = por %p350, %p351
      %p353 = scmp.ne.s32.totalorder %s342, %s345
      %p354 = scmp.eq.s32.totalorder %s31, 3
      %p355 = por %p353, %p354
      %p356 = scmp.ne.s32.totalorder %s345, %s346
      %p357 = scmp.eq.s32.totalorder %s31, 0
      %p358 = por %p356, %p357
      %p359 = scmp.ne.s32.totalorder %s345, %s346
      %p360 = scmp.eq.s32.totalorder %s32, 3
      %p361 = por %p359, %p360
      %p363 = scmp.ne.s32.totalorder %s346, %s362
      %p364 = scmp.eq.s32.totalorder %s32, 0
      %p365 = por %p363, %p364
      %s366 = ssub.s32 %s33, %s45
      %p367 = scmp.eq.s32.totalorder %s366, 0
      %s369 = sadd.s32 %s368, 1
      %s370 = scalar_select %p367, %s368, %s369
      %p373 = pneg %p367
      %p374 = scmp.eq.s32.totalorder %s26, 3
      %p375 = por %p373, %p374
      %p376 = scmp.ne.s32.totalorder %s368, %s371
      %p377 = scmp.eq.s32.totalorder %s26, 0
      %p378 = por %p376, %p377
      %p379 = scmp.ne.s32.totalorder %s368, %s371
      %p380 = scmp.eq.s32.totalorder %s31, 3
      %p381 = por %p379, %p380
      %p382 = scmp.ne.s32.totalorder %s371, %s372
      %p383 = scmp.eq.s32.totalorder %s31, 0
      %p384 = por %p382, %p383
      %p385 = scmp.ne.s32.totalorder %s371, %s372
      %p386 = scmp.eq.s32.totalorder %s32, 3
      %p387 = por %p385, %p386
      %p389 = scmp.ne.s32.totalorder %s372, %s388
      %p390 = scmp.eq.s32.totalorder %s32, 0
      %p391 = por %p389, %p390
      %s392 = ssub.s32 %s33, %s45
      %p393 = scmp.eq.s32.totalorder %s392, 0
      %s395 = sadd.s32 %s394, 1
      %s396 = scalar_select %p393, %s394, %s395
      %p399 = pneg %p393
      %p400 = scmp.eq.s32.totalorder %s26, 3
      %p401 = por %p399, %p400
      %p402 = scmp.ne.s32.totalorder %s394, %s397
      %p403 = scmp.eq.s32.totalorder %s26, 0
      %p404 = por %p402, %p403
      %p405 = scmp.ne.s32.totalorder %s394, %s397
      %p406 = scmp.eq.s32.totalorder %s31, 3
      %p407 = por %p405, %p406
      %p408 = scmp.ne.s32.totalorder %s397, %s398
      %p409 = scmp.eq.s32.totalorder %s31, 0
      %p410 = por %p408, %p409
      %p411 = scmp.ne.s32.totalorder %s397, %s398
      %p412 = scmp.eq.s32.totalorder %s32, 3
      %p413 = por %p411, %p412
      %p415 = scmp.ne.s32.totalorder %s398, %s414
      %p416 = scmp.eq.s32.totalorder %s32, 0
      %p417 = por %p415, %p416
      %s418 = ssub.s32 %s33, %s45
      %p419 = scmp.eq.s32.totalorder %s418, 0
      %s421 = sadd.s32 %s420, 1
      %s422 = scalar_select %p419, %s420, %s421
      %p425 = pneg %p419
      %p426 = scmp.eq.s32.totalorder %s26, 3
      %p427 = por %p425, %p426
      %p428 = scmp.ne.s32.totalorder %s420, %s423
      %p429 = scmp.eq.s32.totalorder %s26, 0
      %p430 = por %p428, %p429
      %p431 = scmp.ne.s32.totalorder %s420, %s423
      %p432 = scmp.eq.s32.totalorder %s31, 3
      %p433 = por %p431, %p432
      %p434 = scmp.ne.s32.totalorder %s423, %s424
      %p435 = scmp.eq.s32.totalorder %s31, 0
      %p436 = por %p434, %p435
      %p437 = scmp.ne.s32.totalorder %s423, %s424
      %p438 = scmp.eq.s32.totalorder %s32, 3
      %p439 = por %p437, %p438
      %p441 = scmp.ne.s32.totalorder %s424, %s440
      %p442 = scmp.eq.s32.totalorder %s32, 0
      %p443 = por %p441, %p442
      %s444 = ssub.s32 %s33, %s45
      %p445 = scmp.eq.s32.totalorder %s444, 0
      %s447 = sadd.s32 %s446, 1
      %s448 = scalar_select %p445, %s446, %s447
      %p451 = pneg %p445
      %p452 = scmp.eq.s32.totalorder %s26, 3
      %p453 = por %p451, %p452
      %p454 = scmp.ne.s32.totalorder %s446, %s449
      %p455 = scmp.eq.s32.totalorder %s26, 0
      %p456 = por %p454, %p455
      %p457 = scmp.ne.s32.totalorder %s446, %s449
      %p458 = scmp.eq.s32.totalorder %s31, 3
      %p459 = por %p457, %p458
      %p460 = scmp.ne.s32.totalorder %s449, %s450
      %p461 = scmp.eq.s32.totalorder %s31, 0
      %p462 = por %p460, %p461
      %p463 = scmp.ne.s32.totalorder %s449, %s450
      %p464 = scmp.eq.s32.totalorder %s32, 3
      %p465 = por %p463, %p464
      %p467 = scmp.ne.s32.totalorder %s450, %s466
      %p468 = scmp.eq.s32.totalorder %s32, 0
      %p469 = por %p467, %p468
      %s470 = ssub.s32 %s33, %s45
      %p471 = scmp.eq.s32.totalorder %s470, 0
      %s473 = sadd.s32 %s472, 1
      %s474 = scalar_select %p471, %s472, %s473
      %p477 = pneg %p471
      %p478 = scmp.eq.s32.totalorder %s26, 3
      %p479 = por %p477, %p478
      %p480 = scmp.ne.s32.totalorder %s472, %s475
      %p481 = scmp.eq.s32.totalorder %s26, 0
      %p482 = por %p480, %p481
      %p483 = scmp.ne.s32.totalorder %s472, %s475
      %p484 = scmp.eq.s32.totalorder %s31, 3
      %p485 = por %p483, %p484
      %p486 = scmp.ne.s32.totalorder %s475, %s476
      %p487 = scmp.eq.s32.totalorder %s31, 0
      %p488 = por %p486, %p487
      %p489 = scmp.ne.s32.totalorder %s475, %s476
      %p490 = scmp.eq.s32.totalorder %s32, 3
      %p491 = por %p489, %p490
      %p493 = scmp.ne.s32.totalorder %s476, %s492
      %p494 = scmp.eq.s32.totalorder %s32, 0
      %p495 = por %p493, %p494
      %s496 = ssub.s32 %s33, %s45
      %s497 = ssub.s32 %s34, %s41
      %s498 = sor.u32 %s496, %s497
      %p499 = scmp.eq.s32.totalorder %s498, 0
      %s501 = sadd.s32 %s500, 1
      %s502 = scalar_select %p499, %s500, %s501
      %p505 = pneg %p499
      %p506 = scmp.eq.s32.totalorder %s26, 3
      %p507 = por %p505, %p506
      %p508 = scmp.ne.s32.totalorder %s500, %s503
      %p509 = scmp.eq.s32.totalorder %s26, 0
      %p510 = por %p508, %p509
      %p511 = scmp.ne.s32.totalorder %s500, %s503
      %p512 = scmp.eq.s32.totalorder %s31, 3
      %p513 = por %p511, %p512
      %p514 = scmp.ne.s32.totalorder %s503, %s504
      %p515 = scmp.eq.s32.totalorder %s31, 0
      %p516 = por %p514, %p515
      %p517 = scmp.ne.s32.totalorder %s503, %s504
      %p518 = scmp.eq.s32.totalorder %s32, 3
      %p519 = por %p517, %p518
      %p521 = scmp.ne.s32.totalorder %s504, %s520
      %p522 = scmp.eq.s32.totalorder %s32, 0
      %p523 = por %p521, %p522
      %p524 = scmp.le.s32.totalorder 1, %s26
      %p525 = scmp.lt.s32.totalorder %s26, 5
      %p526 = pnand %p524, %p525
      %p527 = pneg %p526
      // Predicated region
      $region9: #{lxmert_x_layer.1} parent=5 // pred_check
        _
      $region10: #{lxmert_x_layer.1} parent=5 // pred_check_branch
        %529 = sbr.rel (%p526) target = $region12
      $region11: #{lxmert_x_layer.1} parent=5 // pred_region
        %s530 = ssub.s32 %s26, 1
        // Predicated region
        $region13: #{lxmert_x_layer.1} parent=11 // pred_check
          %p531 = pneg %p175
        $region14: #{lxmert_x_layer.1} parent=11 // pred_check_branch
          %533 = sbr.rel (%p531) target = $region16
        $region15: #{lxmert_x_layer.1} parent=11 // pred_region
          %535 = vsyncadd [#allocation3], 0
          %s536 = sshll.u32 %s4, 4
          %s537 = int_to_ptr.hbm [resolvable:$true] %s536
          %s538 = sshll.u32 [#allocation2], 4
          %s539 = int_to_ptr.vmem [resolvable:$true] %s538
          %544 = dma.hbm_to_vmem [thread:$0]  %s537, 1536, %s539, [#allocation3], 128, 128, 8
        $region16: #{lxmert_x_layer.1} parent=11 // pred_fallthru
          _
        // Predicated region
        $region17: #{lxmert_x_layer.1} parent=11 // pred_check
          %p545 = pneg %p196
        $region18: #{lxmert_x_layer.1} parent=11 // pred_check_branch
          %547 = sbr.rel (%p545) target = $region20
        $region19: #{lxmert_x_layer.1} parent=11 // pred_region
          _
        $region20: #{lxmert_x_layer.1} parent=11 // pred_fallthru
          _
        // Predicated region
        $region21: #{lxmert_x_layer.1} parent=11 // pred_check
          %p548 = pneg %p217
        $region22: #{lxmert_x_layer.1} parent=11 // pred_check_branch
          %550 = sbr.rel (%p548) target = $region24
        $region23: #{lxmert_x_layer.1} parent=11 // pred_region
          %552 = vsyncadd [#allocation5], 0
          %s553 = sshll.u32 %s6, 4
          %s554 = int_to_ptr.hbm [resolvable:$true] %s553
          %s555 = sshll.u32 [#allocation4], 4
          %s556 = int_to_ptr.vmem [resolvable:$true] %s555
          %561 = dma.hbm_to_vmem [thread:$0]  %s554, 512, %s556, [#allocation5], 128, 128, 8
        $region24: #{lxmert_x_layer.1} parent=11 // pred_fallthru
          _
        // Predicated region
        $region25: #{lxmert_x_layer.1} parent=11 // pred_check
          %p562 = pneg %p238
        $region26: #{lxmert_x_layer.1} parent=11 // pred_check_branch
          %564 = sbr.rel (%p562) target = $region28
        $region27: #{lxmert_x_layer.1} parent=11 // pred_region
          _
        $region28: #{lxmert_x_layer.1} parent=11 // pred_fallthru
          _
        // Predicated region
        $region29: #{lxmert_x_layer.1} parent=11 // pred_check
          %p565 = pneg %p259
        $region30: #{lxmert_x_layer.1} parent=11 // pred_check_branch
          %567 = sbr.rel (%p565) target = $region32
        $region31: #{lxmert_x_layer.1} parent=11 // pred_region
          _
        $region32: #{lxmert_x_layer.1} parent=11 // pred_fallthru
          _
        // Predicated region
        $region33: #{lxmert_x_layer.1} parent=11 // pred_check
          %p568 = pneg %p280
        $region34: #{lxmert_x_layer.1} parent=11 // pred_check_branch
          %570 = sbr.rel (%p568) target = $region36
        $region35: #{lxmert_x_layer.1} parent=11 // pred_region
          _
        $region36: #{lxmert_x_layer.1} parent=11 // pred_fallthru
          _
      $region12: #{lxmert_x_layer.1} parent=5 // pred_fallthru
        _
      %p571 = scmp.lt.s32.totalorder %s26, 4
      // Predicated region
      $region37: #{lxmert_x_layer.1} parent=5 // pred_check
        %p572 = pneg %p571
      $region38: #{lxmert_x_layer.1} parent=5 // pred_check_branch
        %574 = sbr.rel (%p572) target = $region40
      $region39: #{lxmert_x_layer.1} parent=5 // pred_region
        // Predicated region
        $region41: #{lxmert_x_layer.1} parent=39 // pred_check
          %p575 = pneg %p60
        $region42: #{lxmert_x_layer.1} parent=39 // pred_check_branch
          %577 = sbr.rel (%p575) target = $region44
        $region43: #{lxmert_x_layer.1} parent=39 // pred_region
          %p578 = scmp.lt.s32.totalorder %s33, 1
          %s579 = scalar_select %p578, %s33, 1
          %p580 = scmp.lt.s32.totalorder %s34, 1
          %s581 = scalar_select %p580, %s34, 1
          %s582 = smul.addr %s581, 2
          %s583 = smul.addr %s579, 4
          %s584 = sadd.s32 %s582, %s583
          %s585 = smul.addr %s584, 8
          %s586 = scalar_lea.vmem %s0, %s585
        $region44: #{lxmert_x_layer.1} parent=39 // pred_fallthru
          _
        // Predicated region
        $region45: #{lxmert_x_layer.1} parent=39 // pred_check
          %p587 = pneg %p90
        $region46: #{lxmert_x_layer.1} parent=39 // pred_check_branch
          %589 = sbr.rel (%p587) target = $region48
        $region47: #{lxmert_x_layer.1} parent=39 // pred_region
          %s590 = ssub.s32 1, %s33
          %p591 = scmp.lt.s32.totalorder %s590, 1
          %s592 = scalar_select %p591, %s590, 1
          %p593 = scmp.lt.s32.totalorder %s34, 1
          %s594 = scalar_select %p593, %s34, 1
          %s595 = smul.addr %s594, 2
          %s596 = smul.addr %s592, 4
          %s597 = sadd.s32 %s595, %s596
          %s598 = smul.addr %s597, 8
          %s599 = scalar_lea.vmem %s1, %s598
          %s600 = ssub.s32 1, %s33
        $region48: #{lxmert_x_layer.1} parent=39 // pred_fallthru
          _
        // Predicated region
        $region49: #{lxmert_x_layer.1} parent=39 // pred_check
          %p601 = pneg %p118
        $region50: #{lxmert_x_layer.1} parent=39 // pred_check_branch
          %603 = sbr.rel (%p601) target = $region52
        $region51: #{lxmert_x_layer.1} parent=39 // pred_region
          %p604 = scmp.lt.s32.totalorder %s33, 1
          %s605 = scalar_select %p604, %s33, 1
          %p606 = scmp.lt.s32.totalorder %s34, 1
          %s607 = scalar_select %p606, %s34, 1
          %s608 = smul.addr %s605, 2
          %s609 = sadd.s32 %s607, %s608
          %s610 = scalar_lea.vmem %s2, %s609
        $region52: #{lxmert_x_layer.1} parent=39 // pred_fallthru
          _
        // Predicated region
        $region53: #{lxmert_x_layer.1} parent=39 // pred_check
          %p611 = pneg %p148
        $region54: #{lxmert_x_layer.1} parent=39 // pred_check_branch
          %613 = sbr.rel (%p611) target = $region56
        $region55: #{lxmert_x_layer.1} parent=39 // pred_region
          %s614 = ssub.s32 1, %s33
          %p615 = scmp.lt.s32.totalorder %s614, 1
          %s616 = scalar_select %p615, %s614, 1
          %p617 = scmp.lt.s32.totalorder %s34, 1
          %s618 = scalar_select %p617, %s34, 1
          %s619 = smul.addr %s616, 2
          %s620 = sadd.s32 %s618, %s619
          %s621 = scalar_lea.vmem %s3, %s620
          %s622 = ssub.s32 1, %s33
        $region56: #{lxmert_x_layer.1} parent=39 // pred_fallthru
          _
        // Predicated region
        $region57: #{lxmert_x_layer.1} parent=39 // pred_check
          %p623 = pneg %p300
        $region58: #{lxmert_x_layer.1} parent=39 // pred_check_branch
          %625 = sbr.rel (%p623) target = $region60
        $region59: #{lxmert_x_layer.1} parent=39 // pred_region
          %p626 = scmp.lt.s32.totalorder %s33, 1
          %s627 = scalar_select %p626, %s33, 1
          %s628 = smul.addr %s627, 12
          %s629 = smul.addr %s628, 8
          %s630 = scalar_lea.vmem %s10, %s629
        $region60: #{lxmert_x_layer.1} parent=39 // pred_fallthru
          _
        // Predicated region
        $region61: #{lxmert_x_layer.1} parent=39 // pred_check
          %p631 = pneg %p326
        $region62: #{lxmert_x_layer.1} parent=39 // pred_check_branch
          %633 = sbr.rel (%p631) target = $region64
        $region63: #{lxmert_x_layer.1} parent=39 // pred_region
          %p634 = scmp.lt.s32.totalorder %s33, 1
          %s635 = scalar_select %p634, %s33, 1
          %s636 = smul.addr %s635, 3
          %s637 = scalar_lea.vmem %s11, %s636
        $region64: #{lxmert_x_layer.1} parent=39 // pred_fallthru
          _
        // Predicated region
        $region65: #{lxmert_x_layer.1} parent=39 // pred_check
          %p638 = pneg %p352
        $region66: #{lxmert_x_layer.1} parent=39 // pred_check_branch
          %640 = sbr.rel (%p638) target = $region68
        $region67: #{lxmert_x_layer.1} parent=39 // pred_region
          %p641 = scmp.lt.s32.totalorder %s33, 1
          %s642 = scalar_select %p641, %s33, 1
          %s643 = smul.addr %s642, 4
          %s644 = smul.addr %s643, 8
          %s645 = scalar_lea.vmem %s12, %s644
        $region68: #{lxmert_x_layer.1} parent=39 // pred_fallthru
          _
        // Predicated region
        $region69: #{lxmert_x_layer.1} parent=39 // pred_check
          %p646 = pneg %p378
        $region70: #{lxmert_x_layer.1} parent=39 // pred_check_branch
          %648 = sbr.rel (%p646) target = $region72
        $region71: #{lxmert_x_layer.1} parent=39 // pred_region
          %p649 = scmp.lt.s32.totalorder %s33, 1
          %s650 = scalar_select %p649, %s33, 1
          %s651 = scalar_lea.vmem %s13, %s650
        $region72: #{lxmert_x_layer.1} parent=39 // pred_fallthru
          _
        // Predicated region
        $region73: #{lxmert_x_layer.1} parent=39 // pred_check
          %p652 = pneg %p404
        $region74: #{lxmert_x_layer.1} parent=39 // pred_check_branch
          %654 = sbr.rel (%p652) target = $region76
        $region75: #{lxmert_x_layer.1} parent=39 // pred_region
          %p655 = scmp.lt.s32.totalorder %s33, 1
          %s656 = scalar_select %p655, %s33, 1
          %s657 = smul.addr %s656, 8
          %s658 = smul.addr %s657, 8
          %s659 = scalar_lea.vmem %s14, %s658
        $region76: #{lxmert_x_layer.1} parent=39 // pred_fallthru
          _
        // Predicated region
        $region77: #{lxmert_x_layer.1} parent=39 // pred_check
          %p660 = pneg %p430
        $region78: #{lxmert_x_layer.1} parent=39 // pred_check_branch
          %662 = sbr.rel (%p660) target = $region80
        $region79: #{lxmert_x_layer.1} parent=39 // pred_region
          %p663 = scmp.lt.s32.totalorder %s33, 1
          %s664 = scalar_select %p663, %s33, 1
          %s665 = scalar_lea.vmem %s15, %s664
        $region80: #{lxmert_x_layer.1} parent=39 // pred_fallthru
          _
        // Predicated region
        $region81: #{lxmert_x_layer.1} parent=39 // pred_check
          %p666 = pneg %p456
        $region82: #{lxmert_x_layer.1} parent=39 // pred_check_branch
          %668 = sbr.rel (%p666) target = $region84
        $region83: #{lxmert_x_layer.1} parent=39 // pred_region
          %p669 = scmp.lt.s32.totalorder %s33, 1
          %s670 = scalar_select %p669, %s33, 1
          %s671 = scalar_lea.vmem %s16, %s670
        $region84: #{lxmert_x_layer.1} parent=39 // pred_fallthru
          _
        // Predicated region
        $region85: #{lxmert_x_layer.1} parent=39 // pred_check
          %p672 = pneg %p482
        $region86: #{lxmert_x_layer.1} parent=39 // pred_check_branch
          %674 = sbr.rel (%p672) target = $region88
        $region87: #{lxmert_x_layer.1} parent=39 // pred_region
          %p675 = scmp.lt.s32.totalorder %s33, 1
          %s676 = scalar_select %p675, %s33, 1
          %s677 = scalar_lea.vmem %s17, %s676
        $region88: #{lxmert_x_layer.1} parent=39 // pred_fallthru
          _
      $region40: #{lxmert_x_layer.1} parent=5 // pred_fallthru
        _
      %p678 = scmp.le.s32.totalorder 1, %s26
      %p679 = scmp.lt.s32.totalorder %s26, 5
      %p680 = pnand %p678, %p679
      %p681 = pneg %p680
      // Predicated region
      $region89: #{lxmert_x_layer.1} parent=5 // pred_check
        _
      $region90: #{lxmert_x_layer.1} parent=5 // pred_check_branch
        %683 = sbr.rel (%p680) target = $region92
      $region91: #{lxmert_x_layer.1} parent=5 // pred_region
        %s684 = ssub.s32 %s26, 1
        // Predicated region
        $region93: #{lxmert_x_layer.1} parent=91 // pred_check
          %p685 = pneg %p175
        $region94: #{lxmert_x_layer.1} parent=91 // pred_check_branch
          %687 = sbr.rel (%p685) target = $region96
        $region95: #{lxmert_x_layer.1} parent=91 // pred_region
          %689 = dma.done [#allocation3], 1536
        $region96: #{lxmert_x_layer.1} parent=91 // pred_fallthru
          _
        // Predicated region
        $region97: #{lxmert_x_layer.1} parent=91 // pred_check
          %p690 = pneg %p217
        $region98: #{lxmert_x_layer.1} parent=91 // pred_check_branch
          %692 = sbr.rel (%p690) target = $region100
        $region99: #{lxmert_x_layer.1} parent=91 // pred_region
          %694 = dma.done [#allocation5], 512
        $region100: #{lxmert_x_layer.1} parent=91 // pred_fallthru
          _
        %p695 = scmp.lt.s32.totalorder %s35, 1
        %s696 = scalar_select %p695, %s35, 1
        %p697 = scmp.lt.s32.totalorder %s36, 1
        %s698 = scalar_select %p697, %s36, 1
        %s699 = smul.addr %s698, 2
        %s700 = smul.addr %s696, 4
        %s701 = sadd.s32 %s699, %s700
        %s702 = smul.addr %s701, 8
        %s703 = scalar_lea.vmem %s0, %s702
        %p704 = pneg %p66
        %p705 = pneg %p63
        %s706 = ssub.s32 1, %s35
        %p707 = scmp.lt.s32.totalorder %s706, 1
        %s708 = scalar_select %p707, %s706, 1
        %p709 = scmp.lt.s32.totalorder %s36, 1
        %s710 = scalar_select %p709, %s36, 1
        %s711 = smul.addr %s710, 2
        %s712 = smul.addr %s708, 4
        %s713 = sadd.s32 %s711, %s712
        %s714 = smul.addr %s713, 8
        %s715 = scalar_lea.vmem %s1, %s714
        %p716 = pneg %p96
        %p717 = pneg %p93
        %p718 = scmp.lt.s32.totalorder %s35, 1
        %s719 = scalar_select %p718, %s35, 1
        %p720 = scmp.lt.s32.totalorder %s36, 1
        %s721 = scalar_select %p720, %s36, 1
        %s722 = smul.addr %s719, 2
        %s723 = sadd.s32 %s721, %s722
        %s724 = scalar_lea.vmem %s2, %s723
        %p725 = pneg %p124
        %p726 = pneg %p121
        %s727 = ssub.s32 1, %s35
        %p728 = scmp.lt.s32.totalorder %s727, 1
        %s729 = scalar_select %p728, %s727, 1
        %p730 = scmp.lt.s32.totalorder %s36, 1
        %s731 = scalar_select %p730, %s36, 1
        %s732 = smul.addr %s729, 2
        %s733 = sadd.s32 %s731, %s732
        %s734 = scalar_lea.vmem %s3, %s733
        %p735 = pneg %p154
        %p736 = pneg %p151
        %p737 = pneg %p175
        %p738 = pneg %p172
        %p739 = pneg %p196
        %p740 = pneg %p193
        %p741 = pneg %p217
        %p742 = pneg %p214
        %p743 = pneg %p238
        %p744 = pneg %p235
        %p745 = pneg %p259
        %p746 = pneg %p256
        %p747 = pneg %p280
        %p748 = pneg %p277
        %p749 = scmp.lt.s32.totalorder %s35, 1
        %s750 = scalar_select %p749, %s35, 1
        %s751 = smul.addr %s750, 12
        %s752 = smul.addr %s751, 8
        %s753 = scalar_lea.vmem %s10, %s752
        %p754 = pneg %p306
        %p755 = pneg %p303
        %p756 = scmp.lt.s32.totalorder %s35, 1
        %s757 = scalar_select %p756, %s35, 1
        %s758 = smul.addr %s757, 3
        %s759 = scalar_lea.vmem %s11, %s758
        %p760 = pneg %p332
        %p761 = pneg %p329
        %p762 = scmp.lt.s32.totalorder %s35, 1
        %s763 = scalar_select %p762, %s35, 1
        %s764 = smul.addr %s763, 4
        %s765 = smul.addr %s764, 8
        %s766 = scalar_lea.vmem %s12, %s765
        %p767 = pneg %p358
        %p768 = pneg %p355
        %p769 = scmp.lt.s32.totalorder %s35, 1
        %s770 = scalar_select %p769, %s35, 1
        %s771 = scalar_lea.vmem %s13, %s770
        %p772 = pneg %p384
        %p773 = pneg %p381
        %p774 = scmp.lt.s32.totalorder %s35, 1
        %s775 = scalar_select %p774, %s35, 1
        %s776 = smul.addr %s775, 8
        %s777 = smul.addr %s776, 8
        %s778 = scalar_lea.vmem %s14, %s777
        %p779 = pneg %p410
        %p780 = pneg %p407
        %p781 = scmp.lt.s32.totalorder %s35, 1
        %s782 = scalar_select %p781, %s35, 1
        %s783 = scalar_lea.vmem %s15, %s782
        %p784 = pneg %p436
        %p785 = pneg %p433
        %p786 = scmp.lt.s32.totalorder %s35, 1
        %s787 = scalar_select %p786, %s35, 1
        %s788 = scalar_lea.vmem %s16, %s787
        %p789 = pneg %p462
        %p790 = pneg %p459
        %p791 = scmp.lt.s32.totalorder %s35, 1
        %s792 = scalar_select %p791, %s35, 1
        %s793 = scalar_lea.vmem %s17, %s792
        %p794 = pneg %p488
        %p795 = pneg %p485
        %p796 = pneg %p516
        %p797 = pneg %p513
        %p798 = scmp.lt.s32.totalorder %s35, 1
        %s799 = scalar_select %p798, %s35, 1
        %p800 = scmp.lt.s32.totalorder %s36, 1
        %s801 = scalar_select %p800, %s36, 1
        %s802 = smul.addr %s801, 2
        %s803 = smul.addr %s799, 4
        %s804 = sadd.s32 %s802, %s803
        %s805 = smul.addr %s804, 8
        %s806 = scalar_lea.vmem %s18, %s805
        %p807 = scmp.lt.s32.totalorder %s35, 1
        %s808 = scalar_select %p807, %s35, 1
        %p809 = scmp.lt.s32.totalorder %s36, 1
        %s810 = scalar_select %p809, %s36, 1
        %s811 = smul.addr %s810, 2
        %s812 = smul.addr %s808, 4
        %s813 = sadd.s32 %s811, %s812
        %s814 = smul.addr %s813, 8
        %s815 = scalar_lea.vmem %s0, %s814
        %s816 = ssub.s32 1, %s35
        %p817 = scmp.lt.s32.totalorder %s816, 1
        %s818 = scalar_select %p817, %s816, 1
        %p819 = scmp.lt.s32.totalorder %s36, 1
        %s820 = scalar_select %p819, %s36, 1
        %s821 = smul.addr %s820, 2
        %s822 = smul.addr %s818, 4
        %s823 = sadd.s32 %s821, %s822
        %s824 = smul.addr %s823, 8
        %s825 = scalar_lea.vmem %s1, %s824
        %s826 = ssub.s32 1, %s35
        %p827 = scmp.lt.s32.totalorder %s35, 1
        %s828 = scalar_select %p827, %s35, 1
        %p829 = scmp.lt.s32.totalorder %s36, 1
        %s830 = scalar_select %p829, %s36, 1
        %s831 = smul.addr %s828, 2
        %s832 = sadd.s32 %s830, %s831
        %s833 = scalar_lea.vmem %s2, %s832
        %s834 = ssub.s32 1, %s35
        %p835 = scmp.lt.s32.totalorder %s834, 1
        %s836 = scalar_select %p835, %s834, 1
        %p837 = scmp.lt.s32.totalorder %s36, 1
        %s838 = scalar_select %p837, %s36, 1
        %s839 = smul.addr %s836, 2
        %s840 = sadd.s32 %s838, %s839
        %s841 = scalar_lea.vmem %s3, %s840
        %s842 = ssub.s32 1, %s35
        %p843 = scmp.lt.s32.totalorder %s35, 1
        %s844 = scalar_select %p843, %s35, 1
        %s845 = smul.addr %s844, 12
        %s846 = smul.addr %s845, 8
        %s847 = scalar_lea.vmem %s10, %s846
        %p848 = scmp.lt.s32.totalorder %s35, 1
        %s849 = scalar_select %p848, %s35, 1
        %s850 = smul.addr %s849, 3
        %s851 = scalar_lea.vmem %s11, %s850
        %p852 = scmp.lt.s32.totalorder %s35, 1
        %s853 = scalar_select %p852, %s35, 1
        %s854 = smul.addr %s853, 4
        %s855 = smul.addr %s854, 8
        %s856 = scalar_lea.vmem %s12, %s855
        %p857 = scmp.lt.s32.totalorder %s35, 1
        %s858 = scalar_select %p857, %s35, 1
        %s859 = scalar_lea.vmem %s13, %s858
        %p860 = scmp.lt.s32.totalorder %s35, 1
        %s861 = scalar_select %p860, %s35, 1
        %s862 = smul.addr %s861, 8
        %s863 = smul.addr %s862, 8
        %s864 = scalar_lea.vmem %s14, %s863
        %p865 = scmp.lt.s32.totalorder %s35, 1
        %s866 = scalar_select %p865, %s35, 1
        %s867 = scalar_lea.vmem %s15, %s866
        %p868 = scmp.lt.s32.totalorder %s35, 1
        %s869 = scalar_select %p868, %s35, 1
        %s870 = scalar_lea.vmem %s16, %s869
        %p871 = scmp.lt.s32.totalorder %s35, 1
        %s872 = scalar_select %p871, %s35, 1
        %s873 = scalar_lea.vmem %s17, %s872
        %p874 = scmp.lt.s32.totalorder %s35, 1
        %s875 = scalar_select %p874, %s35, 1
        %p876 = scmp.lt.s32.totalorder %s36, 1
        %s877 = scalar_select %p876, %s36, 1
        %s878 = smul.addr %s877, 2
        %s879 = smul.addr %s875, 4
        %s880 = sadd.s32 %s878, %s879
        %s881 = smul.addr %s880, 8
        %s882 = scalar_lea.vmem %s18, %s881
        %v883 = vld [vmem:[%s815] sm:$0xff]
        %v884 = vld [vmem:[%s815 + $0x8] sm:$0xff]
        %v885 = vld [vmem:[%s825] sm:$0xff]
        %v886 = vld [vmem:[%s825 + $0x8] sm:$0xff]
        %v887 = vld [vmem:[%s833] sm:$0x1]
        %v888 = vld [vmem:[%s841] sm:$0x1]
        %v889 = vlaneseq
        %v890 = vand.u32 %v889, 127
        %vm891 = vcmp.ge.s32.totalorder %v890, 0
        %vm892 = vcmp.lt.s32.totalorder %v890, 8
        %vm893 = vmand %vm891, %vm892
        %v894 = vsel %vm893, 1, 0
        %v895 = vcvt.s32.f32 %v894
        %vm896 = vcmp.ge.s32.totalorder %v890, 8
        %vm897 = vcmp.lt.s32.totalorder %v890, 16
        %vm898 = vmand %vm896, %vm897
        %v899 = vsel %vm898, 1, 0
        %v900 = vcvt.s32.f32 %v899
        %vm901 = vcmp.ge.s32.totalorder %v890, 16
        %vm902 = vcmp.lt.s32.totalorder %v890, 24
        %vm903 = vmand %vm901, %vm902
        %v904 = vsel %vm903, 1, 0
        %v905 = vcvt.s32.f32 %v904
        %vm906 = vcmp.ge.s32.totalorder %v890, 24
        %vm907 = vcmp.lt.s32.totalorder %v890, 32
        %vm908 = vmand %vm906, %vm907
        %v909 = vsel %vm908, 1, 0
        %v910 = vcvt.s32.f32 %v909
        %v911 = vld [vmem:[#allocation2] sm:$0xff]
        %v912 = vld [vmem:[#allocation2 + $0x8] sm:$0xff]
        %v913 = vld [vmem:[#allocation2 + $0x10] sm:$0xff]
        %v914 = vld [vmem:[#allocation2 + $0x18] sm:$0xff]
        %v915 = vld [vmem:[%s5] sm:$0x1]
        %v917 = vperm.slane %v915, 0
        %vm919 = vcmask 261120
        %v921 = vsel %vm919, %v883, 0
        %v924 = vsel %vm919, %v884, 0
        %926 = vmatpush.msra.mxu0 0.0
        %927 = vmatpush.msra.mxu0 0.0
        %928 = vmatpush.msra.mxu0 0.0
        %929 = vmatpush.msra.mxu0 0.0
        %930 = vmatpush.msra.mxu0 0.0
        %931 = vmatpush.msra.mxu0 0.0
        %932 = vmatpush.msra.mxu0 0.0
        %933 = vmatpush.msra.mxu0 0.0
        %934 = vmatpush.msra.mxu0 0.0
        %935 = vmatpush.msra.mxu0 0.0
        %936 = vmatpush.msra.mxu0 0.0
        %937 = vmatpush.msra.mxu0 0.0
        %938 = vmatpush.msra.mxu0 %v914
        %939 = vmatpush.msra.mxu0 %v913
        %940 = vmatpush.msra.mxu0 %v912
        %941 = vmatpush.msra.mxu0 %v911
        %942 = vmatmul.f32.gmra.mxu0 %v921
        %v943 = vpop.f32.mrf.mxu0
        %v944 = vadd.f32 %v917, %v943
        %945 = vmatmul.f32.gmra.mxu0 %v924
        %v946 = vpop.f32.mrf.mxu0
        %v947 = vadd.f32 %v917, %v946
        %948 = vdwg.mxu0
        %s949 = scalar_lea.vmem [#allocation2], 32
        %v950 = vld [vmem:[%s949] sm:$0xff]
        %v951 = vld [vmem:[%s949 + $0x8] sm:$0xff]
        %v952 = vld [vmem:[%s949 + $0x10] sm:$0xff]
        %v953 = vld [vmem:[%s949 + $0x18] sm:$0xff]
        %s954 = scalar_lea.vmem %s5, 1
        %v955 = vld [vmem:[%s954] sm:$0x1]
        %v957 = vperm.slane %v955, 0
        %v960 = vsel %vm919, %v885, 0
        %v963 = vsel %vm919, %v886, 0
        %965 = vmatpush.msra.mxu0 0.0
        %966 = vmatpush.msra.mxu0 0.0
        %967 = vmatpush.msra.mxu0 0.0
        %968 = vmatpush.msra.mxu0 0.0
        %969 = vmatpush.msra.mxu0 0.0
        %970 = vmatpush.msra.mxu0 0.0
        %971 = vmatpush.msra.mxu0 0.0
        %972 = vmatpush.msra.mxu0 0.0
        %973 = vmatpush.msra.mxu0 0.0
        %974 = vmatpush.msra.mxu0 0.0
        %975 = vmatpush.msra.mxu0 0.0
        %976 = vmatpush.msra.mxu0 0.0
        %977 = vmatpush.msra.mxu0 %v953
        %978 = vmatpush.msra.mxu0 %v952
        %979 = vmatpush.msra.mxu0 %v951
        %980 = vmatpush.msra.mxu0 %v950
        %981 = vmatmul.f32.gmra.mxu0 %v960
        %v982 = vpop.f32.mrf.mxu0
        %v983 = vadd.f32 %v957, %v982
        %984 = vmatmul.f32.gmra.mxu0 %v963
        %v985 = vpop.f32.mrf.mxu0
        %v986 = vadd.f32 %v957, %v985
        %987 = vdwg.mxu0
        %s988 = scalar_lea.vmem [#allocation2], 64
        %v989 = vld [vmem:[%s988] sm:$0xff]
        %v990 = vld [vmem:[%s988 + $0x8] sm:$0xff]
        %v991 = vld [vmem:[%s988 + $0x10] sm:$0xff]
        %v992 = vld [vmem:[%s988 + $0x18] sm:$0xff]
        %s993 = scalar_lea.vmem %s5, 2
        %v994 = vld [vmem:[%s993] sm:$0x1]
        %v996 = vperm.slane %v994, 0
        %998 = vmatpush.msra.mxu0 0.0
        %999 = vmatpush.msra.mxu0 0.0
        %1000 = vmatpush.msra.mxu0 0.0
        %1001 = vmatpush.msra.mxu0 0.0
        %1002 = vmatpush.msra.mxu0 0.0
        %1003 = vmatpush.msra.mxu0 0.0
        %1004 = vmatpush.msra.mxu0 0.0
        %1005 = vmatpush.msra.mxu0 0.0
        %1006 = vmatpush.msra.mxu0 0.0
        %1007 = vmatpush.msra.mxu0 0.0
        %1008 = vmatpush.msra.mxu0 0.0
        %1009 = vmatpush.msra.mxu0 0.0
        %1010 = vmatpush.msra.mxu0 %v992
        %1011 = vmatpush.msra.mxu0 %v991
        %1012 = vmatpush.msra.mxu0 %v990
        %1013 = vmatpush.msra.mxu0 %v989
        %1014 = vmatmul.f32.gmra.mxu0 %v960
        %v1015 = vpop.f32.mrf.mxu0
        %v1016 = vadd.f32 %v996, %v1015
        %1017 = vmatmul.f32.gmra.mxu0 %v963
        %v1018 = vpop.f32.mrf.mxu0
        %v1019 = vadd.f32 %v996, %v1018
        %1020 = vdwg.mxu0
        %v1021 = vmul.f32 %v944, %v895
        %v1022 = vmul.f32 %v947, %v895
        %v1024 = vsel %vm919, %v1021, 0
        %v1027 = vsel %vm919, %v1022, 0
        %v1030 = vsel %vm919, %v983, 0
        %v1033 = vsel %vm919, %v986, 0
        %1035 = vmatpush.xpose.msra.mxu0 0.0
        %1036 = vmatpush.xpose.msra.mxu0 0.0
        %1037 = vmatpush.xpose.msra.mxu0 0.0
        %1038 = vmatpush.xpose.msra.mxu0 0.0
        %1039 = vmatpush.xpose.msra.mxu0 0.0
        %1040 = vmatpush.xpose.msra.mxu0 0.0
        %1041 = vmatpush.xpose.msra.mxu0 0.0
        %1042 = vmatpush.xpose.msra.mxu0 0.0
        %1043 = vmatpush.xpose.msra.mxu0 0.0
        %1044 = vmatpush.xpose.msra.mxu0 0.0
        %1045 = vmatpush.xpose.msra.mxu0 0.0
        %1046 = vmatpush.xpose.msra.mxu0 0.0
        %1047 = vmatpush.xpose.msra.mxu0 0.0
        %1048 = vmatpush.xpose.msra.mxu0 0.0
        %1049 = vmatpush.xpose.msra.mxu0 %v1033
        %1050 = vmatpush.xpose.msra.mxu0 %v1030
        %1051 = vmatmul.f32.gmra.mxu0 %v1024
        %v1052 = vpop.f32.mrf.mxu0
        %v1053 = vadd.f32 0.0, %v1052
        %1054 = vmatmul.f32.gmra.mxu0 %v1027
        %v1055 = vpop.f32.mrf.mxu0
        %v1056 = vadd.f32 0.0, %v1055
        %1057 = vdwg.mxu0
        %v1058 = vmul.f32 %v1053, 0.35355338
        %v1059 = vmul.f32 %v1056, 0.35355338
        %v1061 = vperm.slane %v888, 0
        %v1063 = vadd.f32 %v1058, %v1061
        %v1064 = vadd.f32 %v1059, %v1061
        %vm1065 = vcmask 130048
        %v1066 = vsel %vm1065, %v1063, -inf
        %1067 = vmax.xlane.f32.xlu0 %v1066
        %v1068 = vpop.xlane.xlu0 %1067
        %v1069 = vsel %vm1065, %v1064, -inf
        %1070 = vmax.xlane.f32.xlu0 %v1069
        %v1071 = vpop.xlane.xlu0 %1070
        %v1072 = vsub.f32 %v1063, %v1068
        %v1073 = vsub.f32 %v1064, %v1071
        %v1074 = vmul.f32 %v1072, 1.442695
        %v1075 = vpow.pop %v1074
        %v1076 = vmul.f32 %v1073, 1.442695
        %v1077 = vpow.pop %v1076
        %v1078 = vsel %vm1065, %v1075, 0.0
        %1079 = vadd.xlane.f32.xlu0 %v1078
        %v1080 = vpop.xlane.xlu0 %1079
        %v1081 = vsel %vm1065, %v1077, 0.0
        %1082 = vadd.xlane.f32.xlu0 %v1081
        %v1083 = vpop.xlane.xlu0 %1082
        %v1084 = vrcp.pop %v1080
        %v1085 = vrcp.pop %v1083
        %v1086 = vmul.f32 %v1075, %v1084
        %v1087 = vmul.f32 %v1077, %v1085
        %v1088 = vmul.f32 %v1016, %v895
        %v1089 = vmul.f32 %v1019, %v895
        %v1090 = vmul.f32 %v944, %v900
        %v1091 = vmul.f32 %v947, %v900
        %v1093 = vsel %vm919, %v1090, 0
        %v1096 = vsel %vm919, %v1091, 0
        %1098 = vmatpush.xpose.msra.mxu0 0.0
        %1099 = vmatpush.xpose.msra.mxu0 0.0
        %1100 = vmatpush.xpose.msra.mxu0 0.0
        %1101 = vmatpush.xpose.msra.mxu0 0.0
        %1102 = vmatpush.xpose.msra.mxu0 0.0
        %1103 = vmatpush.xpose.msra.mxu0 0.0
        %1104 = vmatpush.xpose.msra.mxu0 0.0
        %1105 = vmatpush.xpose.msra.mxu0 0.0
        %1106 = vmatpush.xpose.msra.mxu0 0.0
        %1107 = vmatpush.xpose.msra.mxu0 0.0
        %1108 = vmatpush.xpose.msra.mxu0 0.0
        %1109 = vmatpush.xpose.msra.mxu0 0.0
        %1110 = vmatpush.xpose.msra.mxu0 0.0
        %1111 = vmatpush.xpose.msra.mxu0 0.0
        %1112 = vmatpush.xpose.msra.mxu0 %v1033
        %1113 = vmatpush.xpose.msra.mxu0 %v1030
        %1114 = vmatmul.f32.gmra.mxu0 %v1093
        %v1115 = vpop.f32.mrf.mxu0
        %v1116 = vadd.f32 0.0, %v1115
        %1117 = vmatmul.f32.gmra.mxu0 %v1096
        %v1118 = vpop.f32.mrf.mxu0
        %v1119 = vadd.f32 0.0, %v1118
        %1120 = vdwg.mxu0
        %v1121 = vmul.f32 %v1116, 0.35355338
        %v1122 = vmul.f32 %v1119, 0.35355338
        %v1123 = vadd.f32 %v1121, %v1061
        %v1124 = vadd.f32 %v1122, %v1061
        %v1125 = vsel %vm1065, %v1123, -inf
        %1126 = vmax.xlane.f32.xlu0 %v1125
        %v1127 = vpop.xlane.xlu0 %1126
        %v1128 = vsel %vm1065, %v1124, -inf
        %1129 = vmax.xlane.f32.xlu0 %v1128
        %v1130 = vpop.xlane.xlu0 %1129
        %v1131 = vsub.f32 %v1123, %v1127
        %v1132 = vsub.f32 %v1124, %v1130
        %v1133 = vmul.f32 %v1131, 1.442695
        %v1134 = vpow.pop %v1133
        %v1135 = vmul.f32 %v1132, 1.442695
        %v1136 = vpow.pop %v1135
        %v1137 = vsel %vm1065, %v1134, 0.0
        %1138 = vadd.xlane.f32.xlu0 %v1137
        %v1139 = vpop.xlane.xlu0 %1138
        %v1140 = vsel %vm1065, %v1136, 0.0
        %1141 = vadd.xlane.f32.xlu0 %v1140
        %v1142 = vpop.xlane.xlu0 %1141
        %v1143 = vrcp.pop %v1139
        %v1144 = vrcp.pop %v1142
        %v1145 = vmul.f32 %v1134, %v1143
        %v1146 = vmul.f32 %v1136, %v1144
        %v1147 = vmul.f32 %v1016, %v900
        %v1148 = vmul.f32 %v1019, %v900
        %v1150 = vsel %vm1065, %v1145, 0
        %v1153 = vsel %vm1065, %v1146, 0
        %1155 = vmatpush.msra.mxu0 0.0
        %1156 = vmatpush.msra.mxu0 0.0
        %1157 = vmatpush.msra.mxu0 0.0
        %1158 = vmatpush.msra.mxu0 0.0
        %1159 = vmatpush.msra.mxu0 0.0
        %1160 = vmatpush.msra.mxu0 0.0
        %1161 = vmatpush.msra.mxu0 0.0
        %1162 = vmatpush.msra.mxu0 0.0
        %1163 = vmatpush.msra.mxu0 0.0
        %1164 = vmatpush.msra.mxu0 0.0
        %1165 = vmatpush.msra.mxu0 0.0
        %1166 = vmatpush.msra.mxu0 0.0
        %1167 = vmatpush.msra.mxu0 0.0
        %1168 = vmatpush.msra.mxu0 0.0
        %1169 = vmatpush.msra.mxu0 %v1148
        %1170 = vmatpush.msra.mxu0 %v1147
        %1171 = vmatmul.f32.gmra.mxu0 %v1150
        %v1172 = vpop.f32.mrf.mxu0
        %v1173 = vadd.f32 0.0, %v1172
        %1174 = vmatmul.f32.gmra.mxu0 %v1153
        %v1175 = vpop.f32.mrf.mxu0
        %v1176 = vadd.f32 0.0, %v1175
        %1177 = vdwg.mxu0
        %v1179 = vsel %vm1065, %v1086, 0
        %v1182 = vsel %vm1065, %v1087, 0
        %1184 = vmatpush.msra.mxu0 0.0
        %1185 = vmatpush.msra.mxu0 0.0
        %1186 = vmatpush.msra.mxu0 0.0
        %1187 = vmatpush.msra.mxu0 0.0
        %1188 = vmatpush.msra.mxu0 0.0
        %1189 = vmatpush.msra.mxu0 0.0
        %1190 = vmatpush.msra.mxu0 0.0
        %1191 = vmatpush.msra.mxu0 0.0
        %1192 = vmatpush.msra.mxu0 0.0
        %1193 = vmatpush.msra.mxu0 0.0
        %1194 = vmatpush.msra.mxu0 0.0
        %1195 = vmatpush.msra.mxu0 0.0
        %1196 = vmatpush.msra.mxu0 0.0
        %1197 = vmatpush.msra.mxu0 0.0
        %1198 = vmatpush.msra.mxu0 %v1089
        %1199 = vmatpush.msra.mxu0 %v1088
        %1200 = vmatmul.f32.gmra.mxu0 %v1179
        %v1201 = vpop.f32.mrf.mxu0
        %v1202 = vadd.f32 %v1173, %v1201
        %1203 = vmatmul.f32.gmra.mxu0 %v1182
        %v1204 = vpop.f32.mrf.mxu0
        %v1205 = vadd.f32 %v1176, %v1204
        %1206 = vdwg.mxu0
        %v1207 = vmul.f32 %v944, %v905
        %v1208 = vmul.f32 %v947, %v905
        %v1210 = vsel %vm919, %v1207, 0
        %v1213 = vsel %vm919, %v1208, 0
        %1215 = vmatpush.xpose.msra.mxu0 0.0
        %1216 = vmatpush.xpose.msra.mxu0 0.0
        %1217 = vmatpush.xpose.msra.mxu0 0.0
        %1218 = vmatpush.xpose.msra.mxu0 0.0
        %1219 = vmatpush.xpose.msra.mxu0 0.0
        %1220 = vmatpush.xpose.msra.mxu0 0.0
        %1221 = vmatpush.xpose.msra.mxu0 0.0
        %1222 = vmatpush.xpose.msra.mxu0 0.0
        %1223 = vmatpush.xpose.msra.mxu0 0.0
        %1224 = vmatpush.xpose.msra.mxu0 0.0
        %1225 = vmatpush.xpose.msra.mxu0 0.0
        %1226 = vmatpush.xpose.msra.mxu0 0.0
        %1227 = vmatpush.xpose.msra.mxu0 0.0
        %1228 = vmatpush.xpose.msra.mxu0 0.0
        %1229 = vmatpush.xpose.msra.mxu0 %v1033
        %1230 = vmatpush.xpose.msra.mxu0 %v1030
        %1231 = vmatmul.f32.gmra.mxu0 %v1210
        %v1232 = vpop.f32.mrf.mxu0
        %v1233 = vadd.f32 0.0, %v1232
        %1234 = vmatmul.f32.gmra.mxu0 %v1213
        %v1235 = vpop.f32.mrf.mxu0
        %v1236 = vadd.f32 0.0, %v1235
        %1237 = vdwg.mxu0
        %v1238 = vmul.f32 %v1233, 0.35355338
        %v1239 = vmul.f32 %v1236, 0.35355338
        %v1240 = vadd.f32 %v1238, %v1061
        %v1241 = vadd.f32 %v1239, %v1061
        %v1242 = vsel %vm1065, %v1240, -inf
        %1243 = vmax.xlane.f32.xlu0 %v1242
        %v1244 = vpop.xlane.xlu0 %1243
        %v1245 = vsel %vm1065, %v1241, -inf
        %1246 = vmax.xlane.f32.xlu0 %v1245
        %v1247 = vpop.xlane.xlu0 %1246
        %v1248 = vsub.f32 %v1240, %v1244
        %v1249 = vsub.f32 %v1241, %v1247
        %v1250 = vmul.f32 %v1248, 1.442695
        %v1251 = vpow.pop %v1250
        %v1252 = vmul.f32 %v1249, 1.442695
        %v1253 = vpow.pop %v1252
        %v1254 = vsel %vm1065, %v1251, 0.0
        %1255 = vadd.xlane.f32.xlu0 %v1254
        %v1256 = vpop.xlane.xlu0 %1255
        %v1257 = vsel %vm1065, %v1253, 0.0
        %1258 = vadd.xlane.f32.xlu0 %v1257
        %v1259 = vpop.xlane.xlu0 %1258
        %v1260 = vrcp.pop %v1256
        %v1261 = vrcp.pop %v1259
        %v1262 = vmul.f32 %v1251, %v1260
        %v1263 = vmul.f32 %v1253, %v1261
        %v1264 = vmul.f32 %v1016, %v905
        %v1265 = vmul.f32 %v1019, %v905
        %v1267 = vsel %vm1065, %v1262, 0
        %v1270 = vsel %vm1065, %v1263, 0
        %1272 = vmatpush.msra.mxu0 0.0
        %1273 = vmatpush.msra.mxu0 0.0
        %1274 = vmatpush.msra.mxu0 0.0
        %1275 = vmatpush.msra.mxu0 0.0
        %1276 = vmatpush.msra.mxu0 0.0
        %1277 = vmatpush.msra.mxu0 0.0
        %1278 = vmatpush.msra.mxu0 0.0
        %1279 = vmatpush.msra.mxu0 0.0
        %1280 = vmatpush.msra.mxu0 0.0
        %1281 = vmatpush.msra.mxu0 0.0
        %1282 = vmatpush.msra.mxu0 0.0
        %1283 = vmatpush.msra.mxu0 0.0
        %1284 = vmatpush.msra.mxu0 0.0
        %1285 = vmatpush.msra.mxu0 0.0
        %1286 = vmatpush.msra.mxu0 %v1265
        %1287 = vmatpush.msra.mxu0 %v1264
        %1288 = vmatmul.f32.gmra.mxu0 %v1267
        %v1289 = vpop.f32.mrf.mxu0
        %v1290 = vadd.f32 0.0, %v1289
        %1291 = vmatmul.f32.gmra.mxu0 %v1270
        %v1292 = vpop.f32.mrf.mxu0
        %v1293 = vadd.f32 0.0, %v1292
        %1294 = vdwg.mxu0
        %v1295 = vadd.f32 %v1202, %v1290
        %v1296 = vadd.f32 %v1205, %v1293
        %v1297 = vmul.f32 %v944, %v910
        %v1298 = vmul.f32 %v947, %v910
        %v1300 = vsel %vm919, %v1297, 0
        %v1303 = vsel %vm919, %v1298, 0
        %1305 = vmatpush.xpose.msra.mxu0 0.0
        %1306 = vmatpush.xpose.msra.mxu0 0.0
        %1307 = vmatpush.xpose.msra.mxu0 0.0
        %1308 = vmatpush.xpose.msra.mxu0 0.0
        %1309 = vmatpush.xpose.msra.mxu0 0.0
        %1310 = vmatpush.xpose.msra.mxu0 0.0
        %1311 = vmatpush.xpose.msra.mxu0 0.0
        %1312 = vmatpush.xpose.msra.mxu0 0.0
        %1313 = vmatpush.xpose.msra.mxu0 0.0
        %1314 = vmatpush.xpose.msra.mxu0 0.0
        %1315 = vmatpush.xpose.msra.mxu0 0.0
        %1316 = vmatpush.xpose.msra.mxu0 0.0
        %1317 = vmatpush.xpose.msra.mxu0 0.0
        %1318 = vmatpush.xpose.msra.mxu0 0.0
        %1319 = vmatpush.xpose.msra.mxu0 %v1033
        %1320 = vmatpush.xpose.msra.mxu0 %v1030
        %1321 = vmatmul.f32.gmra.mxu0 %v1300
        %v1322 = vpop.f32.mrf.mxu0
        %v1323 = vadd.f32 0.0, %v1322
        %1324 = vmatmul.f32.gmra.mxu0 %v1303
        %v1325 = vpop.f32.mrf.mxu0
        %v1326 = vadd.f32 0.0, %v1325
        %1327 = vdwg.mxu0
        %v1328 = vmul.f32 %v1323, 0.35355338
        %v1329 = vmul.f32 %v1326, 0.35355338
        %v1330 = vadd.f32 %v1328, %v1061
        %v1331 = vadd.f32 %v1329, %v1061
        %v1332 = vsel %vm1065, %v1330, -inf
        %1333 = vmax.xlane.f32.xlu0 %v1332
        %v1334 = vpop.xlane.xlu0 %1333
        %v1335 = vsel %vm1065, %v1331, -inf
        %1336 = vmax.xlane.f32.xlu0 %v1335
        %v1337 = vpop.xlane.xlu0 %1336
        %v1338 = vsub.f32 %v1330, %v1334
        %v1339 = vsub.f32 %v1331, %v1337
        %v1340 = vmul.f32 %v1338, 1.442695
        %v1341 = vpow.pop %v1340
        %v1342 = vmul.f32 %v1339, 1.442695
        %v1343 = vpow.pop %v1342
        %v1344 = vsel %vm1065, %v1341, 0.0
        %1345 = vadd.xlane.f32.xlu0 %v1344
        %v1346 = vpop.xlane.xlu0 %1345
        %v1347 = vsel %vm1065, %v1343, 0.0
        %1348 = vadd.xlane.f32.xlu0 %v1347
        %v1349 = vpop.xlane.xlu0 %1348
        %v1350 = vrcp.pop %v1346
        %v1351 = vrcp.pop %v1349
        %v1352 = vmul.f32 %v1341, %v1350
        %v1353 = vmul.f32 %v1343, %v1351
        %v1354 = vmul.f32 %v1016, %v910
        %v1355 = vmul.f32 %v1019, %v910
        %v1357 = vsel %vm1065, %v1352, 0
        %v1360 = vsel %vm1065, %v1353, 0
        %1362 = vmatpush.msra.mxu0 0.0
        %1363 = vmatpush.msra.mxu0 0.0
        %1364 = vmatpush.msra.mxu0 0.0
        %1365 = vmatpush.msra.mxu0 0.0
        %1366 = vmatpush.msra.mxu0 0.0
        %1367 = vmatpush.msra.mxu0 0.0
        %1368 = vmatpush.msra.mxu0 0.0
        %1369 = vmatpush.msra.mxu0 0.0
        %1370 = vmatpush.msra.mxu0 0.0
        %1371 = vmatpush.msra.mxu0 0.0
        %1372 = vmatpush.msra.mxu0 0.0
        %1373 = vmatpush.msra.mxu0 0.0
        %1374 = vmatpush.msra.mxu0 0.0
        %1375 = vmatpush.msra.mxu0 0.0
        %1376 = vmatpush.msra.mxu0 %v1355
        %1377 = vmatpush.msra.mxu0 %v1354
        %1378 = vmatmul.f32.gmra.mxu0 %v1357
        %v1379 = vpop.f32.mrf.mxu0
        %v1380 = vadd.f32 0.0, %v1379
        %1381 = vmatmul.f32.gmra.mxu0 %v1360
        %v1382 = vpop.f32.mrf.mxu0
        %v1383 = vadd.f32 0.0, %v1382
        %1384 = vdwg.mxu0
        %v1385 = vadd.f32 %v1295, %v1380
        %v1386 = vadd.f32 %v1296, %v1383
        %v1387 = vld [vmem:[#allocation4] sm:$0xff]
        %v1388 = vld [vmem:[#allocation4 + $0x8] sm:$0xff]
        %v1389 = vld [vmem:[#allocation4 + $0x10] sm:$0xff]
        %v1390 = vld [vmem:[#allocation4 + $0x18] sm:$0xff]
        %v1391 = vld [vmem:[%s7] sm:$0x1]
        %v1393 = vperm.slane %v1391, 0
        %v1396 = vsel %vm919, %v1385, 0
        %v1399 = vsel %vm919, %v1386, 0
        %1401 = vmatpush.msra.mxu0 0.0
        %1402 = vmatpush.msra.mxu0 0.0
        %1403 = vmatpush.msra.mxu0 0.0
        %1404 = vmatpush.msra.mxu0 0.0
        %1405 = vmatpush.msra.mxu0 0.0
        %1406 = vmatpush.msra.mxu0 0.0
        %1407 = vmatpush.msra.mxu0 0.0
        %1408 = vmatpush.msra.mxu0 0.0
        %1409 = vmatpush.msra.mxu0 0.0
        %1410 = vmatpush.msra.mxu0 0.0
        %1411 = vmatpush.msra.mxu0 0.0
        %1412 = vmatpush.msra.mxu0 0.0
        %1413 = vmatpush.msra.mxu0 %v1390
        %1414 = vmatpush.msra.mxu0 %v1389
        %1415 = vmatpush.msra.mxu0 %v1388
        %1416 = vmatpush.msra.mxu0 %v1387
        %1417 = vmatmul.f32.gmra.mxu0 %v1396
        %v1418 = vpop.f32.mrf.mxu0
        %v1419 = vadd.f32 %v1393, %v1418
        %1420 = vmatmul.f32.gmra.mxu0 %v1399
        %v1421 = vpop.f32.mrf.mxu0
        %v1422 = vadd.f32 %v1393, %v1421
        %1423 = vdwg.mxu0
        %v1424 = vadd.f32 %v1419, %v883
        %v1425 = vadd.f32 %v1422, %v884
        %v1426 = vld [vmem:[%s8] sm:$0x1]
        %v1427 = vld [vmem:[%s9] sm:$0x1]
        %v1428 = vsel %vm919, %v1424, 0.0
        %1429 = vadd.xlane.f32.xlu0 %v1428
        %v1430 = vpop.xlane.xlu0 %1429
        %v1431 = vsel %vm919, %v1425, 0.0
        %1432 = vadd.xlane.f32.xlu0 %v1431
        %v1433 = vpop.xlane.xlu0 %1432
        %v1434 = vrcp.pop 32.0
        %v1435 = vmul.f32 32.0, %v1434
        %v1436 = vsub.f32 1.0, %v1435
        %v1437 = vmul.f32 %v1434, %v1436
        %v1438 = vadd.f32 %v1434, %v1437
        %vm1439 = vweird.f32 %v1434
        %v1440 = vsel %vm1439, %v1434, %v1438
        %v1441 = vmul.f32 %v1430, %v1440
        %v1442 = vmul.f32 %v1433, %v1440
        %v1443 = vsub.f32 %v1424, %v1441
        %v1444 = vsub.f32 %v1425, %v1442
        %v1445 = vmul.f32 %v1443, %v1443
        %v1446 = vmul.f32 %v1444, %v1444
        %v1447 = vsel %vm919, %v1445, 0.0
        %1448 = vadd.xlane.f32.xlu0 %v1447
        %v1449 = vpop.xlane.xlu0 %1448
        %v1450 = vsel %vm919, %v1446, 0.0
        %1451 = vadd.xlane.f32.xlu0 %v1450
        %v1452 = vpop.xlane.xlu0 %1451
        %v1453 = vmul.f32 %v1449, %v1440
        %v1454 = vmul.f32 %v1452, %v1440
        %v1455 = vadd.f32 %v1453, 1e-12
        %v1456 = vadd.f32 %v1454, 1e-12
        %v1457 = vrsqrt.pop %v1455
        %v1458 = vmul.f32 %v1457, %v1455
        %v1459 = vmul.f32 %v1458, %v1457
        %v1460 = vmul.f32 0.5, %v1459
        %v1461 = vsub.f32 1.5, %v1460
        %v1462 = vmul.f32 %v1457, %v1461
        %vm1463 = vweird.f32 %v1455
        %vm1464 = vweird.f32 %v1457
        %vm1465 = vmor %vm1463, %vm1464
        %v1466 = vsel %vm1465, %v1457, %v1462
        %v1467 = vrsqrt.pop %v1456
        %v1468 = vmul.f32 %v1467, %v1456
        %v1469 = vmul.f32 %v1468, %v1467
        %v1470 = vmul.f32 0.5, %v1469
        %v1471 = vsub.f32 1.5, %v1470
        %v1472 = vmul.f32 %v1467, %v1471
        %vm1473 = vweird.f32 %v1456
        %vm1474 = vweird.f32 %v1467
        %vm1475 = vmor %vm1473, %vm1474
        %v1476 = vsel %vm1475, %v1467, %v1472
        %v1477 = vmul.f32 %v1443, %v1466
        %v1478 = vmul.f32 %v1444, %v1476
        %v1480 = vperm.slane %v1426, 0
        %v1482 = vmul.f32 %v1477, %v1480
        %v1483 = vmul.f32 %v1478, %v1480
        %v1485 = vperm.slane %v1427, 0
        %v1487 = vadd.f32 %v1482, %v1485
        %v1488 = vadd.f32 %v1483, %v1485
        %v1489 = vld [vmem:[%s847] sm:$0xff]
        %v1490 = vld [vmem:[%s847 + $0x8] sm:$0xff]
        %v1491 = vld [vmem:[%s847 + $0x10] sm:$0xff]
        %v1492 = vld [vmem:[%s847 + $0x18] sm:$0xff]
        %v1493 = vld [vmem:[%s851] sm:$0x1]
        %v1495 = vperm.slane %v1493, 0
        %v1498 = vsel %vm919, %v1487, 0
        %v1501 = vsel %vm919, %v1488, 0
        %1503 = vmatpush.msra.mxu0 0.0
        %1504 = vmatpush.msra.mxu0 0.0
        %1505 = vmatpush.msra.mxu0 0.0
        %1506 = vmatpush.msra.mxu0 0.0
        %1507 = vmatpush.msra.mxu0 0.0
        %1508 = vmatpush.msra.mxu0 0.0
        %1509 = vmatpush.msra.mxu0 0.0
        %1510 = vmatpush.msra.mxu0 0.0
        %1511 = vmatpush.msra.mxu0 0.0
        %1512 = vmatpush.msra.mxu0 0.0
        %1513 = vmatpush.msra.mxu0 0.0
        %1514 = vmatpush.msra.mxu0 0.0
        %1515 = vmatpush.msra.mxu0 %v1492
        %1516 = vmatpush.msra.mxu0 %v1491
        %1517 = vmatpush.msra.mxu0 %v1490
        %1518 = vmatpush.msra.mxu0 %v1489
        %1519 = vmatmul.f32.gmra.mxu0 %v1498
        %v1520 = vpop.f32.mrf.mxu0
        %v1521 = vadd.f32 %v1495, %v1520
        %1522 = vmatmul.f32.gmra.mxu0 %v1501
        %v1523 = vpop.f32.mrf.mxu0
        %v1524 = vadd.f32 %v1495, %v1523
        %1525 = vdwg.mxu0
        %s1526 = scalar_lea.vmem %s847, 32
        %v1527 = vld [vmem:[%s1526] sm:$0xff]
        %v1528 = vld [vmem:[%s1526 + $0x8] sm:$0xff]
        %v1529 = vld [vmem:[%s1526 + $0x10] sm:$0xff]
        %v1530 = vld [vmem:[%s1526 + $0x18] sm:$0xff]
        %s1531 = scalar_lea.vmem %s851, 1
        %v1532 = vld [vmem:[%s1531] sm:$0x1]
        %v1534 = vperm.slane %v1532, 0
        %1536 = vmatpush.msra.mxu0 0.0
        %1537 = vmatpush.msra.mxu0 0.0
        %1538 = vmatpush.msra.mxu0 0.0
        %1539 = vmatpush.msra.mxu0 0.0
        %1540 = vmatpush.msra.mxu0 0.0
        %1541 = vmatpush.msra.mxu0 0.0
        %1542 = vmatpush.msra.mxu0 0.0
        %1543 = vmatpush.msra.mxu0 0.0
        %1544 = vmatpush.msra.mxu0 0.0
        %1545 = vmatpush.msra.mxu0 0.0
        %1546 = vmatpush.msra.mxu0 0.0
        %1547 = vmatpush.msra.mxu0 0.0
        %1548 = vmatpush.msra.mxu0 %v1530
        %1549 = vmatpush.msra.mxu0 %v1529
        %1550 = vmatpush.msra.mxu0 %v1528
        %1551 = vmatpush.msra.mxu0 %v1527
        %1552 = vmatmul.f32.gmra.mxu0 %v1498
        %v1553 = vpop.f32.mrf.mxu0
        %v1554 = vadd.f32 %v1534, %v1553
        %1555 = vmatmul.f32.gmra.mxu0 %v1501
        %v1556 = vpop.f32.mrf.mxu0
        %v1557 = vadd.f32 %v1534, %v1556
        %1558 = vdwg.mxu0
        %s1559 = scalar_lea.vmem %s847, 64
        %v1560 = vld [vmem:[%s1559] sm:$0xff]
        %v1561 = vld [vmem:[%s1559 + $0x8] sm:$0xff]
        %v1562 = vld [vmem:[%s1559 + $0x10] sm:$0xff]
        %v1563 = vld [vmem:[%s1559 + $0x18] sm:$0xff]
        %s1564 = scalar_lea.vmem %s851, 2
        %v1565 = vld [vmem:[%s1564] sm:$0x1]
        %v1567 = vperm.slane %v1565, 0
        %1569 = vmatpush.msra.mxu0 0.0
        %1570 = vmatpush.msra.mxu0 0.0
        %1571 = vmatpush.msra.mxu0 0.0
        %1572 = vmatpush.msra.mxu0 0.0
        %1573 = vmatpush.msra.mxu0 0.0
        %1574 = vmatpush.msra.mxu0 0.0
        %1575 = vmatpush.msra.mxu0 0.0
        %1576 = vmatpush.msra.mxu0 0.0
        %1577 = vmatpush.msra.mxu0 0.0
        %1578 = vmatpush.msra.mxu0 0.0
        %1579 = vmatpush.msra.mxu0 0.0
        %1580 = vmatpush.msra.mxu0 0.0
        %1581 = vmatpush.msra.mxu0 %v1563
        %1582 = vmatpush.msra.mxu0 %v1562
        %1583 = vmatpush.msra.mxu0 %v1561
        %1584 = vmatpush.msra.mxu0 %v1560
        %1585 = vmatmul.f32.gmra.mxu0 %v1498
        %v1586 = vpop.f32.mrf.mxu0
        %v1587 = vadd.f32 %v1567, %v1586
        %1588 = vmatmul.f32.gmra.mxu0 %v1501
        %v1589 = vpop.f32.mrf.mxu0
        %v1590 = vadd.f32 %v1567, %v1589
        %1591 = vdwg.mxu0
        %v1592 = vmul.f32 %v1521, %v895
        %v1593 = vmul.f32 %v1524, %v895
        %v1595 = vsel %vm919, %v1592, 0
        %v1598 = vsel %vm919, %v1593, 0
        %v1601 = vsel %vm919, %v1554, 0
        %v1604 = vsel %vm919, %v1557, 0
        %1606 = vmatpush.xpose.msra.mxu0 0.0
        %1607 = vmatpush.xpose.msra.mxu0 0.0
        %1608 = vmatpush.xpose.msra.mxu0 0.0
        %1609 = vmatpush.xpose.msra.mxu0 0.0
        %1610 = vmatpush.xpose.msra.mxu0 0.0
        %1611 = vmatpush.xpose.msra.mxu0 0.0
        %1612 = vmatpush.xpose.msra.mxu0 0.0
        %1613 = vmatpush.xpose.msra.mxu0 0.0
        %1614 = vmatpush.xpose.msra.mxu0 0.0
        %1615 = vmatpush.xpose.msra.mxu0 0.0
        %1616 = vmatpush.xpose.msra.mxu0 0.0
        %1617 = vmatpush.xpose.msra.mxu0 0.0
        %1618 = vmatpush.xpose.msra.mxu0 0.0
        %1619 = vmatpush.xpose.msra.mxu0 0.0
        %1620 = vmatpush.xpose.msra.mxu0 %v1604
        %1621 = vmatpush.xpose.msra.mxu0 %v1601
        %1622 = vmatmul.f32.gmra.mxu0 %v1595
        %v1623 = vpop.f32.mrf.mxu0
        %v1624 = vadd.f32 0.0, %v1623
        %1625 = vmatmul.f32.gmra.mxu0 %v1598
        %v1626 = vpop.f32.mrf.mxu0
        %v1627 = vadd.f32 0.0, %v1626
        %1628 = vdwg.mxu0
        %v1629 = vmul.f32 %v1624, 0.35355338
        %v1630 = vmul.f32 %v1627, 0.35355338
        %v1632 = vperm.slane %v887, 0
        %v1634 = vadd.f32 %v1629, %v1632
        %v1635 = vadd.f32 %v1630, %v1632
        %v1636 = vsel %vm1065, %v1634, -inf
        %1637 = vmax.xlane.f32.xlu0 %v1636
        %v1638 = vpop.xlane.xlu0 %1637
        %v1639 = vsel %vm1065, %v1635, -inf
        %1640 = vmax.xlane.f32.xlu0 %v1639
        %v1641 = vpop.xlane.xlu0 %1640
        %v1642 = vsub.f32 %v1634, %v1638
        %v1643 = vsub.f32 %v1635, %v1641
        %v1644 = vmul.f32 %v1642, 1.442695
        %v1645 = vpow.pop %v1644
        %v1646 = vmul.f32 %v1643, 1.442695
        %v1647 = vpow.pop %v1646
        %v1648 = vsel %vm1065, %v1645, 0.0
        %1649 = vadd.xlane.f32.xlu0 %v1648
        %v1650 = vpop.xlane.xlu0 %1649
        %v1651 = vsel %vm1065, %v1647, 0.0
        %1652 = vadd.xlane.f32.xlu0 %v1651
        %v1653 = vpop.xlane.xlu0 %1652
        %v1654 = vrcp.pop %v1650
        %v1655 = vrcp.pop %v1653
        %v1656 = vmul.f32 %v1645, %v1654
        %v1657 = vmul.f32 %v1647, %v1655
        %v1658 = vmul.f32 %v1587, %v895
        %v1659 = vmul.f32 %v1590, %v895
        %v1660 = vmul.f32 %v1521, %v900
        %v1661 = vmul.f32 %v1524, %v900
        %v1663 = vsel %vm919, %v1660, 0
        %v1666 = vsel %vm919, %v1661, 0
        %1668 = vmatpush.xpose.msra.mxu0 0.0
        %1669 = vmatpush.xpose.msra.mxu0 0.0
        %1670 = vmatpush.xpose.msra.mxu0 0.0
        %1671 = vmatpush.xpose.msra.mxu0 0.0
        %1672 = vmatpush.xpose.msra.mxu0 0.0
        %1673 = vmatpush.xpose.msra.mxu0 0.0
        %1674 = vmatpush.xpose.msra.mxu0 0.0
        %1675 = vmatpush.xpose.msra.mxu0 0.0
        %1676 = vmatpush.xpose.msra.mxu0 0.0
        %1677 = vmatpush.xpose.msra.mxu0 0.0
        %1678 = vmatpush.xpose.msra.mxu0 0.0
        %1679 = vmatpush.xpose.msra.mxu0 0.0
        %1680 = vmatpush.xpose.msra.mxu0 0.0
        %1681 = vmatpush.xpose.msra.mxu0 0.0
        %1682 = vmatpush.xpose.msra.mxu0 %v1604
        %1683 = vmatpush.xpose.msra.mxu0 %v1601
        %1684 = vmatmul.f32.gmra.mxu0 %v1663
        %v1685 = vpop.f32.mrf.mxu0
        %v1686 = vadd.f32 0.0, %v1685
        %1687 = vmatmul.f32.gmra.mxu0 %v1666
        %v1688 = vpop.f32.mrf.mxu0
        %v1689 = vadd.f32 0.0, %v1688
        %1690 = vdwg.mxu0
        %v1691 = vmul.f32 %v1686, 0.35355338
        %v1692 = vmul.f32 %v1689, 0.35355338
        %v1693 = vadd.f32 %v1691, %v1632
        %v1694 = vadd.f32 %v1692, %v1632
        %v1695 = vsel %vm1065, %v1693, -inf
        %1696 = vmax.xlane.f32.xlu0 %v1695
        %v1697 = vpop.xlane.xlu0 %1696
        %v1698 = vsel %vm1065, %v1694, -inf
        %1699 = vmax.xlane.f32.xlu0 %v1698
        %v1700 = vpop.xlane.xlu0 %1699
        %v1701 = vsub.f32 %v1693, %v1697
        %v1702 = vsub.f32 %v1694, %v1700
        %v1703 = vmul.f32 %v1701, 1.442695
        %v1704 = vpow.pop %v1703
        %v1705 = vmul.f32 %v1702, 1.442695
        %v1706 = vpow.pop %v1705
        %v1707 = vsel %vm1065, %v1704, 0.0
        %1708 = vadd.xlane.f32.xlu0 %v1707
        %v1709 = vpop.xlane.xlu0 %1708
        %v1710 = vsel %vm1065, %v1706, 0.0
        %1711 = vadd.xlane.f32.xlu0 %v1710
        %v1712 = vpop.xlane.xlu0 %1711
        %v1713 = vrcp.pop %v1709
        %v1714 = vrcp.pop %v1712
        %v1715 = vmul.f32 %v1704, %v1713
        %v1716 = vmul.f32 %v1706, %v1714
        %v1717 = vmul.f32 %v1587, %v900
        %v1718 = vmul.f32 %v1590, %v900
        %v1720 = vsel %vm1065, %v1715, 0
        %v1723 = vsel %vm1065, %v1716, 0
        %1725 = vmatpush.msra.mxu0 0.0
        %1726 = vmatpush.msra.mxu0 0.0
        %1727 = vmatpush.msra.mxu0 0.0
        %1728 = vmatpush.msra.mxu0 0.0
        %1729 = vmatpush.msra.mxu0 0.0
        %1730 = vmatpush.msra.mxu0 0.0
        %1731 = vmatpush.msra.mxu0 0.0
        %1732 = vmatpush.msra.mxu0 0.0
        %1733 = vmatpush.msra.mxu0 0.0
        %1734 = vmatpush.msra.mxu0 0.0
        %1735 = vmatpush.msra.mxu0 0.0
        %1736 = vmatpush.msra.mxu0 0.0
        %1737 = vmatpush.msra.mxu0 0.0
        %1738 = vmatpush.msra.mxu0 0.0
        %1739 = vmatpush.msra.mxu0 %v1718
        %1740 = vmatpush.msra.mxu0 %v1717
        %1741 = vmatmul.f32.gmra.mxu0 %v1720
        %v1742 = vpop.f32.mrf.mxu0
        %v1743 = vadd.f32 0.0, %v1742
        %1744 = vmatmul.f32.gmra.mxu0 %v1723
        %v1745 = vpop.f32.mrf.mxu0
        %v1746 = vadd.f32 0.0, %v1745
        %1747 = vdwg.mxu0
        %v1749 = vsel %vm1065, %v1656, 0
        %v1752 = vsel %vm1065, %v1657, 0
        %1754 = vmatpush.msra.mxu0 0.0
        %1755 = vmatpush.msra.mxu0 0.0
        %1756 = vmatpush.msra.mxu0 0.0
        %1757 = vmatpush.msra.mxu0 0.0
        %1758 = vmatpush.msra.mxu0 0.0
        %1759 = vmatpush.msra.mxu0 0.0
        %1760 = vmatpush.msra.mxu0 0.0
        %1761 = vmatpush.msra.mxu0 0.0
        %1762 = vmatpush.msra.mxu0 0.0
        %1763 = vmatpush.msra.mxu0 0.0
        %1764 = vmatpush.msra.mxu0 0.0
        %1765 = vmatpush.msra.mxu0 0.0
        %1766 = vmatpush.msra.mxu0 0.0
        %1767 = vmatpush.msra.mxu0 0.0
        %1768 = vmatpush.msra.mxu0 %v1659
        %1769 = vmatpush.msra.mxu0 %v1658
        %1770 = vmatmul.f32.gmra.mxu0 %v1749
        %v1771 = vpop.f32.mrf.mxu0
        %v1772 = vadd.f32 %v1743, %v1771
        %1773 = vmatmul.f32.gmra.mxu0 %v1752
        %v1774 = vpop.f32.mrf.mxu0
        %v1775 = vadd.f32 %v1746, %v1774
        %1776 = vdwg.mxu0
        %v1777 = vmul.f32 %v1521, %v905
        %v1778 = vmul.f32 %v1524, %v905
        %v1780 = vsel %vm919, %v1777, 0
        %v1783 = vsel %vm919, %v1778, 0
        %1785 = vmatpush.xpose.msra.mxu0 0.0
        %1786 = vmatpush.xpose.msra.mxu0 0.0
        %1787 = vmatpush.xpose.msra.mxu0 0.0
        %1788 = vmatpush.xpose.msra.mxu0 0.0
        %1789 = vmatpush.xpose.msra.mxu0 0.0
        %1790 = vmatpush.xpose.msra.mxu0 0.0
        %1791 = vmatpush.xpose.msra.mxu0 0.0
        %1792 = vmatpush.xpose.msra.mxu0 0.0
        %1793 = vmatpush.xpose.msra.mxu0 0.0
        %1794 = vmatpush.xpose.msra.mxu0 0.0
        %1795 = vmatpush.xpose.msra.mxu0 0.0
        %1796 = vmatpush.xpose.msra.mxu0 0.0
        %1797 = vmatpush.xpose.msra.mxu0 0.0
        %1798 = vmatpush.xpose.msra.mxu0 0.0
        %1799 = vmatpush.xpose.msra.mxu0 %v1604
        %1800 = vmatpush.xpose.msra.mxu0 %v1601
        %1801 = vmatmul.f32.gmra.mxu0 %v1780
        %v1802 = vpop.f32.mrf.mxu0
        %v1803 = vadd.f32 0.0, %v1802
        %1804 = vmatmul.f32.gmra.mxu0 %v1783
        %v1805 = vpop.f32.mrf.mxu0
        %v1806 = vadd.f32 0.0, %v1805
        %1807 = vdwg.mxu0
        %v1808 = vmul.f32 %v1803, 0.35355338
        %v1809 = vmul.f32 %v1806, 0.35355338
        %v1810 = vadd.f32 %v1808, %v1632
        %v1811 = vadd.f32 %v1809, %v1632
        %v1812 = vsel %vm1065, %v1810, -inf
        %1813 = vmax.xlane.f32.xlu0 %v1812
        %v1814 = vpop.xlane.xlu0 %1813
        %v1815 = vsel %vm1065, %v1811, -inf
        %1816 = vmax.xlane.f32.xlu0 %v1815
        %v1817 = vpop.xlane.xlu0 %1816
        %v1818 = vsub.f32 %v1810, %v1814
        %v1819 = vsub.f32 %v1811, %v1817
        %v1820 = vmul.f32 %v1818, 1.442695
        %v1821 = vpow.pop %v1820
        %v1822 = vmul.f32 %v1819, 1.442695
        %v1823 = vpow.pop %v1822
        %v1824 = vsel %vm1065, %v1821, 0.0
        %1825 = vadd.xlane.f32.xlu0 %v1824
        %v1826 = vpop.xlane.xlu0 %1825
        %v1827 = vsel %vm1065, %v1823, 0.0
        %1828 = vadd.xlane.f32.xlu0 %v1827
        %v1829 = vpop.xlane.xlu0 %1828
        %v1830 = vrcp.pop %v1826
        %v1831 = vrcp.pop %v1829
        %v1832 = vmul.f32 %v1821, %v1830
        %v1833 = vmul.f32 %v1823, %v1831
        %v1834 = vmul.f32 %v1587, %v905
        %v1835 = vmul.f32 %v1590, %v905
        %v1837 = vsel %vm1065, %v1832, 0
        %v1840 = vsel %vm1065, %v1833, 0
        %1842 = vmatpush.msra.mxu0 0.0
        %1843 = vmatpush.msra.mxu0 0.0
        %1844 = vmatpush.msra.mxu0 0.0
        %1845 = vmatpush.msra.mxu0 0.0
        %1846 = vmatpush.msra.mxu0 0.0
        %1847 = vmatpush.msra.mxu0 0.0
        %1848 = vmatpush.msra.mxu0 0.0
        %1849 = vmatpush.msra.mxu0 0.0
        %1850 = vmatpush.msra.mxu0 0.0
        %1851 = vmatpush.msra.mxu0 0.0
        %1852 = vmatpush.msra.mxu0 0.0
        %1853 = vmatpush.msra.mxu0 0.0
        %1854 = vmatpush.msra.mxu0 0.0
        %1855 = vmatpush.msra.mxu0 0.0
        %1856 = vmatpush.msra.mxu0 %v1835
        %1857 = vmatpush.msra.mxu0 %v1834
        %1858 = vmatmul.f32.gmra.mxu0 %v1837
        %v1859 = vpop.f32.mrf.mxu0
        %v1860 = vadd.f32 0.0, %v1859
        %1861 = vmatmul.f32.gmra.mxu0 %v1840
        %v1862 = vpop.f32.mrf.mxu0
        %v1863 = vadd.f32 0.0, %v1862
        %1864 = vdwg.mxu0
        %v1865 = vadd.f32 %v1772, %v1860
        %v1866 = vadd.f32 %v1775, %v1863
        %v1867 = vmul.f32 %v1521, %v910
        %v1868 = vmul.f32 %v1524, %v910
        %v1870 = vsel %vm919, %v1867, 0
        %v1873 = vsel %vm919, %v1868, 0
        %1875 = vmatpush.xpose.msra.mxu0 0.0
        %1876 = vmatpush.xpose.msra.mxu0 0.0
        %1877 = vmatpush.xpose.msra.mxu0 0.0
        %1878 = vmatpush.xpose.msra.mxu0 0.0
        %1879 = vmatpush.xpose.msra.mxu0 0.0
        %1880 = vmatpush.xpose.msra.mxu0 0.0
        %1881 = vmatpush.xpose.msra.mxu0 0.0
        %1882 = vmatpush.xpose.msra.mxu0 0.0
        %1883 = vmatpush.xpose.msra.mxu0 0.0
        %1884 = vmatpush.xpose.msra.mxu0 0.0
        %1885 = vmatpush.xpose.msra.mxu0 0.0
        %1886 = vmatpush.xpose.msra.mxu0 0.0
        %1887 = vmatpush.xpose.msra.mxu0 0.0
        %1888 = vmatpush.xpose.msra.mxu0 0.0
        %1889 = vmatpush.xpose.msra.mxu0 %v1604
        %1890 = vmatpush.xpose.msra.mxu0 %v1601
        %1891 = vmatmul.f32.gmra.mxu0 %v1870
        %v1892 = vpop.f32.mrf.mxu0
        %v1893 = vadd.f32 0.0, %v1892
        %1894 = vmatmul.f32.gmra.mxu0 %v1873
        %v1895 = vpop.f32.mrf.mxu0
        %v1896 = vadd.f32 0.0, %v1895
        %1897 = vdwg.mxu0
        %v1898 = vmul.f32 %v1893, 0.35355338
        %v1899 = vmul.f32 %v1896, 0.35355338
        %v1900 = vadd.f32 %v1898, %v1632
        %v1901 = vadd.f32 %v1899, %v1632
        %v1902 = vsel %vm1065, %v1900, -inf
        %1903 = vmax.xlane.f32.xlu0 %v1902
        %v1904 = vpop.xlane.xlu0 %1903
        %v1905 = vsel %vm1065, %v1901, -inf
        %1906 = vmax.xlane.f32.xlu0 %v1905
        %v1907 = vpop.xlane.xlu0 %1906
        %v1908 = vsub.f32 %v1900, %v1904
        %v1909 = vsub.f32 %v1901, %v1907
        %v1910 = vmul.f32 %v1908, 1.442695
        %v1911 = vpow.pop %v1910
        %v1912 = vmul.f32 %v1909, 1.442695
        %v1913 = vpow.pop %v1912
        %v1914 = vsel %vm1065, %v1911, 0.0
        %1915 = vadd.xlane.f32.xlu0 %v1914
        %v1916 = vpop.xlane.xlu0 %1915
        %v1917 = vsel %vm1065, %v1913, 0.0
        %1918 = vadd.xlane.f32.xlu0 %v1917
        %v1919 = vpop.xlane.xlu0 %1918
        %v1920 = vrcp.pop %v1916
        %v1921 = vrcp.pop %v1919
        %v1922 = vmul.f32 %v1911, %v1920
        %v1923 = vmul.f32 %v1913, %v1921
        %v1924 = vmul.f32 %v1587, %v910
        %v1925 = vmul.f32 %v1590, %v910
        %v1927 = vsel %vm1065, %v1922, 0
        %v1930 = vsel %vm1065, %v1923, 0
        %1932 = vmatpush.msra.mxu0 0.0
        %1933 = vmatpush.msra.mxu0 0.0
        %1934 = vmatpush.msra.mxu0 0.0
        %1935 = vmatpush.msra.mxu0 0.0
        %1936 = vmatpush.msra.mxu0 0.0
        %1937 = vmatpush.msra.mxu0 0.0
        %1938 = vmatpush.msra.mxu0 0.0
        %1939 = vmatpush.msra.mxu0 0.0
        %1940 = vmatpush.msra.mxu0 0.0
        %1941 = vmatpush.msra.mxu0 0.0
        %1942 = vmatpush.msra.mxu0 0.0
        %1943 = vmatpush.msra.mxu0 0.0
        %1944 = vmatpush.msra.mxu0 0.0
        %1945 = vmatpush.msra.mxu0 0.0
        %1946 = vmatpush.msra.mxu0 %v1925
        %1947 = vmatpush.msra.mxu0 %v1924
        %1948 = vmatmul.f32.gmra.mxu0 %v1927
        %v1949 = vpop.f32.mrf.mxu0
        %v1950 = vadd.f32 0.0, %v1949
        %1951 = vmatmul.f32.gmra.mxu0 %v1930
        %v1952 = vpop.f32.mrf.mxu0
        %v1953 = vadd.f32 0.0, %v1952
        %1954 = vdwg.mxu0
        %v1955 = vadd.f32 %v1865, %v1950
        %v1956 = vadd.f32 %v1866, %v1953
        %v1957 = vld [vmem:[%s856] sm:$0xff]
        %v1958 = vld [vmem:[%s856 + $0x8] sm:$0xff]
        %v1959 = vld [vmem:[%s856 + $0x10] sm:$0xff]
        %v1960 = vld [vmem:[%s856 + $0x18] sm:$0xff]
        %v1961 = vld [vmem:[%s859] sm:$0x1]
        %v1963 = vperm.slane %v1961, 0
        %v1966 = vsel %vm919, %v1955, 0
        %v1969 = vsel %vm919, %v1956, 0
        %1971 = vmatpush.msra.mxu0 0.0
        %1972 = vmatpush.msra.mxu0 0.0
        %1973 = vmatpush.msra.mxu0 0.0
        %1974 = vmatpush.msra.mxu0 0.0
        %1975 = vmatpush.msra.mxu0 0.0
        %1976 = vmatpush.msra.mxu0 0.0
        %1977 = vmatpush.msra.mxu0 0.0
        %1978 = vmatpush.msra.mxu0 0.0
        %1979 = vmatpush.msra.mxu0 0.0
        %1980 = vmatpush.msra.mxu0 0.0
        %1981 = vmatpush.msra.mxu0 0.0
        %1982 = vmatpush.msra.mxu0 0.0
        %1983 = vmatpush.msra.mxu0 %v1960
        %1984 = vmatpush.msra.mxu0 %v1959
        %1985 = vmatpush.msra.mxu0 %v1958
        %1986 = vmatpush.msra.mxu0 %v1957
        %1987 = vmatmul.f32.gmra.mxu0 %v1966
        %v1988 = vpop.f32.mrf.mxu0
        %v1989 = vadd.f32 %v1963, %v1988
        %1990 = vmatmul.f32.gmra.mxu0 %v1969
        %v1991 = vpop.f32.mrf.mxu0
        %v1992 = vadd.f32 %v1963, %v1991
        %1993 = vdwg.mxu0
        %v1994 = vmul.f32 %v1989, 0.5
        %v1995 = vmul.f32 %v1992, 0.5
        %v1996 = vmul.f32 %v1989, 0.70710677
        %v1997 = vmul.f32 %v1992, 0.70710677
        %v1998 = vmul.f32 %v1996, %v1996
        %v1999 = vmin.f32 16.0, %v1998
        %v2000 = vmul.f32 %v1999, 2.1237322e-06
        %v2001 = vadd.f32 %v2000, 0.00028619796
        %v2002 = vmul.f32 %v1999, %v2001
        %v2003 = vadd.f32 %v2002, 0.0036580483
        %v2004 = vmul.f32 %v1999, %v2003
        %v2005 = vadd.f32 %v2004, 0.05243302
        %v2006 = vmul.f32 %v1999, %v2005
        %v2007 = vadd.f32 %v2006, 0.18741608
        %v2008 = vmul.f32 %v1999, %v2007
        %v2009 = vadd.f32 %v2008, 1.1283791
        %v2010 = vmul.f32 %v1996, %v2009
        %v2011 = vmul.f32 %v1999, 3.8918573e-05
        %v2012 = vadd.f32 %v2011, 0.001143296
        %v2013 = vmul.f32 %v1999, %v2012
        %v2014 = vadd.f32 %v2013, 0.014752088
        %v2015 = vmul.f32 %v1999, %v2014
        %v2016 = vadd.f32 %v2015, 0.112945676
        %v2017 = vmul.f32 %v1999, %v2016
        %v2018 = vadd.f32 %v2017, 0.4994258
        %v2019 = vmul.f32 %v1999, %v2018
        %v2020 = vadd.f32 %v2019, 1.0
        %v2021 = vrcp.pop %v2020
        %v2022 = vmul.f32 %v2020, %v2021
        %v2023 = vsub.f32 1.0, %v2022
        %v2024 = vmul.f32 %v2021, %v2023
        %v2025 = vadd.f32 %v2021, %v2024
        %vm2026 = vweird.f32 %v2020
        %vm2027 = vweird.f32 %v2021
        %vm2028 = vmor %vm2026, %vm2027
        %v2029 = vsel %vm2028, %v2021, %v2025
        %v2030 = vand.u32 2147483647, %v2020
        %vm2031 = vcmp.eq.f32.partialorder %v2030, 8.507059e+37
        %v2032 = vand.u32 %v2020, 2147483648
        %v2033 = vor.u32 1.1754944e-38, %v2032
        %v2034 = vsel %vm2031, %v2033, %v2029
        %v2035 = vmul.f32 %v2010, %v2034
        %v2036 = vmin.f32 %v2035, 1.0
        %v2037 = vmax.f32 %v2036, -1.0
        %v2038 = vmul.f32 %v1997, %v1997
        %v2039 = vmin.f32 16.0, %v2038
        %v2040 = vmul.f32 %v2039, 2.1237322e-06
        %v2041 = vadd.f32 %v2040, 0.00028619796
        %v2042 = vmul.f32 %v2039, %v2041
        %v2043 = vadd.f32 %v2042, 0.0036580483
        %v2044 = vmul.f32 %v2039, %v2043
        %v2045 = vadd.f32 %v2044, 0.05243302
        %v2046 = vmul.f32 %v2039, %v2045
        %v2047 = vadd.f32 %v2046, 0.18741608
        %v2048 = vmul.f32 %v2039, %v2047
        %v2049 = vadd.f32 %v2048, 1.1283791
        %v2050 = vmul.f32 %v1997, %v2049
        %v2051 = vmul.f32 %v2039, 3.8918573e-05
        %v2052 = vadd.f32 %v2051, 0.001143296
        %v2053 = vmul.f32 %v2039, %v2052
        %v2054 = vadd.f32 %v2053, 0.014752088
        %v2055 = vmul.f32 %v2039, %v2054
        %v2056 = vadd.f32 %v2055, 0.112945676
        %v2057 = vmul.f32 %v2039, %v2056
        %v2058 = vadd.f32 %v2057, 0.4994258
        %v2059 = vmul.f32 %v2039, %v2058
        %v2060 = vadd.f32 %v2059, 1.0
        %v2061 = vrcp.pop %v2060
        %v2062 = vmul.f32 %v2060, %v2061
        %v2063 = vsub.f32 1.0, %v2062
        %v2064 = vmul.f32 %v2061, %v2063
        %v2065 = vadd.f32 %v2061, %v2064
        %vm2066 = vweird.f32 %v2060
        %vm2067 = vweird.f32 %v2061
        %vm2068 = vmor %vm2066, %vm2067
        %v2069 = vsel %vm2068, %v2061, %v2065
        %v2070 = vand.u32 2147483647, %v2060
        %vm2071 = vcmp.eq.f32.partialorder %v2070, 8.507059e+37
        %v2072 = vand.u32 %v2060, 2147483648
        %v2073 = vor.u32 1.1754944e-38, %v2072
        %v2074 = vsel %vm2071, %v2073, %v2069
        %v2075 = vmul.f32 %v2050, %v2074
        %v2076 = vmin.f32 %v2075, 1.0
        %v2077 = vmax.f32 %v2076, -1.0
        %v2078 = vadd.f32 %v2037, 1.0
        %v2079 = vadd.f32 %v2077, 1.0
        %v2080 = vmul.f32 %v1994, %v2078
        %v2081 = vmul.f32 %v1995, %v2079
        %v2082 = vld [vmem:[%s864] sm:$0xff]
        %v2083 = vld [vmem:[%s864 + $0x8] sm:$0xff]
        %v2084 = vld [vmem:[%s864 + $0x10] sm:$0xff]
        %v2085 = vld [vmem:[%s864 + $0x18] sm:$0xff]
        %v2086 = vld [vmem:[%s864 + $0x20] sm:$0xff]
        %v2087 = vld [vmem:[%s864 + $0x28] sm:$0xff]
        %v2088 = vld [vmem:[%s864 + $0x30] sm:$0xff]
        %v2089 = vld [vmem:[%s864 + $0x38] sm:$0xff]
        %v2090 = vld [vmem:[%s867] sm:$0x1]
        %v2092 = vperm.slane %v2090, 0
        %vm2094 = vcmask 523264
        %v2096 = vsel %vm2094, %v2080, 0
        %v2099 = vsel %vm2094, %v2081, 0
        %2101 = vmatpush.msra.mxu0 0.0
        %2102 = vmatpush.msra.mxu0 0.0
        %2103 = vmatpush.msra.mxu0 0.0
        %2104 = vmatpush.msra.mxu0 0.0
        %2105 = vmatpush.msra.mxu0 0.0
        %2106 = vmatpush.msra.mxu0 0.0
        %2107 = vmatpush.msra.mxu0 0.0
        %2108 = vmatpush.msra.mxu0 0.0
        %2109 = vmatpush.msra.mxu0 %v2089
        %2110 = vmatpush.msra.mxu0 %v2088
        %2111 = vmatpush.msra.mxu0 %v2087
        %2112 = vmatpush.msra.mxu0 %v2086
        %2113 = vmatpush.msra.mxu0 %v2085
        %2114 = vmatpush.msra.mxu0 %v2084
        %2115 = vmatpush.msra.mxu0 %v2083
        %2116 = vmatpush.msra.mxu0 %v2082
        %2117 = vmatmul.f32.gmra.mxu0 %v2096
        %v2118 = vpop.f32.mrf.mxu0
        %v2119 = vadd.f32 %v2092, %v2118
        %2120 = vmatmul.f32.gmra.mxu0 %v2099
        %v2121 = vpop.f32.mrf.mxu0
        %v2122 = vadd.f32 %v2092, %v2121
        %2123 = vdwg.mxu0
        %v2124 = vadd.f32 %v2119, %v1955
        %v2125 = vadd.f32 %v2122, %v1956
        %v2126 = vld [vmem:[%s870] sm:$0x1]
        %v2127 = vld [vmem:[%s873] sm:$0x1]
        %v2128 = vsel %vm919, %v2124, 0.0
        %2129 = vadd.xlane.f32.xlu0 %v2128
        %v2130 = vpop.xlane.xlu0 %2129
        %v2131 = vsel %vm919, %v2125, 0.0
        %2132 = vadd.xlane.f32.xlu0 %v2131
        %v2133 = vpop.xlane.xlu0 %2132
        %v2134 = vmul.f32 %v2130, %v1440
        %v2135 = vmul.f32 %v2133, %v1440
        %v2136 = vsub.f32 %v2124, %v2134
        %v2137 = vsub.f32 %v2125, %v2135
        %v2138 = vmul.f32 %v2136, %v2136
        %v2139 = vmul.f32 %v2137, %v2137
        %v2140 = vsel %vm919, %v2138, 0.0
        %2141 = vadd.xlane.f32.xlu0 %v2140
        %v2142 = vpop.xlane.xlu0 %2141
        %v2143 = vsel %vm919, %v2139, 0.0
        %2144 = vadd.xlane.f32.xlu0 %v2143
        %v2145 = vpop.xlane.xlu0 %2144
        %v2146 = vmul.f32 %v2142, %v1440
        %v2147 = vmul.f32 %v2145, %v1440
        %v2148 = vadd.f32 %v2146, 1e-12
        %v2149 = vadd.f32 %v2147, 1e-12
        %v2150 = vrsqrt.pop %v2148
        %v2151 = vmul.f32 %v2150, %v2148
        %v2152 = vmul.f32 %v2151, %v2150
        %v2153 = vmul.f32 0.5, %v2152
        %v2154 = vsub.f32 1.5, %v2153
        %v2155 = vmul.f32 %v2150, %v2154
        %vm2156 = vweird.f32 %v2148
        %vm2157 = vweird.f32 %v2150
        %vm2158 = vmor %vm2156, %vm2157
        %v2159 = vsel %vm2158, %v2150, %v2155
        %v2160 = vrsqrt.pop %v2149
        %v2161 = vmul.f32 %v2160, %v2149
        %v2162 = vmul.f32 %v2161, %v2160
        %v2163 = vmul.f32 0.5, %v2162
        %v2164 = vsub.f32 1.5, %v2163
        %v2165 = vmul.f32 %v2160, %v2164
        %vm2166 = vweird.f32 %v2149
        %vm2167 = vweird.f32 %v2160
        %vm2168 = vmor %vm2166, %vm2167
        %v2169 = vsel %vm2168, %v2160, %v2165
        %v2170 = vmul.f32 %v2136, %v2159
        %v2171 = vmul.f32 %v2137, %v2169
        %v2173 = vperm.slane %v2126, 0
        %v2175 = vmul.f32 %v2170, %v2173
        %v2176 = vmul.f32 %v2171, %v2173
        %v2178 = vperm.slane %v2127, 0
        %v2180 = vadd.f32 %v2175, %v2178
        %v2181 = vadd.f32 %v2176, %v2178
        %2182 = vst.msk [vmem:[%s882] sm:$0xff] %vm919, %v2180
        %2183 = vst.msk [vmem:[%s882 + $0x8] sm:$0xff] %vm919, %v2181
        %p2184 = scmp.lt.s32.totalorder %s35, 1
        %s2185 = scalar_select %p2184, %s35, 1
        %p2186 = scmp.lt.s32.totalorder %s36, 1
        %s2187 = scalar_select %p2186, %s36, 1
        %s2188 = smul.addr %s2187, 2
        %s2189 = smul.addr %s2185, 4
        %s2190 = sadd.s32 %s2188, %s2189
        %s2191 = smul.addr %s2190, 8
        %s2192 = scalar_lea.vmem %s18, %s2191
        // Predicated region
        $region101: #{lxmert_x_layer.1} parent=91 // pred_check
          %p2193 = pneg %p513
        $region102: #{lxmert_x_layer.1} parent=91 // pred_check_branch
          %2195 = sbr.rel (%p2193) target = $region104
        $region103: #{lxmert_x_layer.1} parent=91 // pred_region
          _
        $region104: #{lxmert_x_layer.1} parent=91 // pred_fallthru
          _
      $region92: #{lxmert_x_layer.1} parent=5 // pred_fallthru
        _
      %p2196 = scmp.le.s32.totalorder 2, %s26
      // Predicated region
      $region105: #{lxmert_x_layer.1} parent=5 // pred_check
        %p2197 = pneg %p2196
      $region106: #{lxmert_x_layer.1} parent=5 // pred_check_branch
        %2199 = sbr.rel (%p2197) target = $region108
      $region107: #{lxmert_x_layer.1} parent=5 // pred_region
        %s2200 = ssub.s32 %s26, 2
        // Predicated region
        $region109: #{lxmert_x_layer.1} parent=107 // pred_check
          %p2201 = pneg %p519
        $region110: #{lxmert_x_layer.1} parent=107 // pred_check_branch
          %2203 = sbr.rel (%p2201) target = $region112
        $region111: #{lxmert_x_layer.1} parent=107 // pred_region
          %p2204 = scmp.lt.s32.totalorder %s37, 1
          %s2205 = scalar_select %p2204, %s37, 1
          %p2206 = scmp.lt.s32.totalorder %s38, 1
          %s2207 = scalar_select %p2206, %s38, 1
          %s2208 = smul.addr %s2207, 2
          %s2209 = smul.addr %s2205, 4
          %s2210 = sadd.s32 %s2208, %s2209
          %s2211 = smul.addr %s2210, 8
          %s2212 = scalar_lea.vmem %s18, %s2211
        $region112: #{lxmert_x_layer.1} parent=107 // pred_fallthru
          _
      $region108: #{lxmert_x_layer.1} parent=5 // pred_fallthru
        _
    $region6: #{lxmert_x_layer.1} parent=1 // loop_footer
      %s30 = sadd.s32 1, %s26
    $region7: #{lxmert_x_layer.1} parent=1 // loop_footer_branch
      %25 = sbr.rel target = $region3
    $region8: #{lxmert_x_layer.1} parent=1 // loop_exit
      _
    %2213 = vsyncpa [#allocation3], 1
    %s2214 = scalar_lea.sflag [#allocation3], 1
    %2215 = vsyncpa %s2214, 1
    %2216 = vsyncpa [#allocation5], 1

</llo_original>
